<compile_context>
chip_gen: v7x
topology: tpu7x:2x2x1
jax: 0.10.0
libtpu: 0.0.40
codegen_flags: <defaults>
</compile_context>

<pallas_src>
import math

import jax
import jax.numpy as jnp
from jax.experimental import pallas as pl
from jax.experimental.pallas import tpu as pltpu


# ----------------------------- config ---------------------------------------
B = 2            # batch
S = 8            # sequence length
H = 64           # hidden_size
NH = 4           # num_attention_heads
DH = H // NH     # attention_head_size
I = 128          # intermediate_size
NUM_LAYERS = 2   # num_hidden_layers
LN_EPS = 1e-12

R = NH * S       # head-flattened attention rows per batch
NEG_INF = -1e9   # cross-head attention block (underflows to exactly 0 after softmax)

# rows of the packed per-layer vector block (biases + LayerNorm params)
_ROW_BQKV, _ROW_BO, _ROW_G1, _ROW_B1, _ROW_BI, _ROW_B2, _ROW_G2, _ROW_B2N = range(8)
_VEC_ROWS = 8
_VEC_COLS = 256  # >= 3*H and a multiple of 128


def _layer_norm(x, gamma, beta):
    # TF-style LayerNorm: eps inside the sqrt (matches BERTLayerNorm); rsqrt -> EUP slot
    u = jnp.mean(x, axis=-1, keepdims=True)
    s = jnp.mean((x - u) ** 2, axis=-1, keepdims=True)
    return gamma * ((x - u) * jax.lax.rsqrt(s + LN_EPS)) + beta


def _gelu(x):
    # exact (erf) GELU variant used by the module
    return x * 0.5 * (1.0 + jax.lax.erf(x / math.sqrt(2.0)))


def _head_rows(t):
    """(S, NH*DH) head-major columns -> (NH*S, DH); head h occupies rows h*S:(h+1)*S."""
    return jnp.concatenate([t[:, h * DH:(h + 1) * DH] for h in range(NH)], axis=0)


def _merge_heads(t):
    """(NH*S, DH) -> (S, NH*DH) head-major columns."""
    return jnp.concatenate([t[h * S:(h + 1) * S, :] for h in range(NH)], axis=1)


# ----------------------------- kernel ---------------------------------------
def _bert_encoder_kernel(x_ref, mask_ref, wqkv_ref, wo_ref, wi_ref, w2_ref,
                         vec_ref, out_ref, x_scr):
    layer = pl.program_id(1)

    # layer 0 of this batch tile: bring the input activation into the resident scratch
    @pl.when(layer == 0)
    def _():
        x_scr[...] = x_ref[0]

    x = x_scr[...]                        # (S, H)   resident across layer iterations
    mask = mask_ref[0]                    # (R, R)   head-block-diagonal additive mask

    wqkv = wqkv_ref[0]                    # (H, 3H)  Q columns pre-scaled by 1/sqrt(DH)
    wo = wo_ref[0]                        # (H, H)
    wi = wi_ref[0]                        # (H, I)
    w2 = w2_ref[0]                        # (I, H)
    vec = vec_ref[0]                      # (_VEC_ROWS, _VEC_COLS) packed biases / LN params

    bqkv = vec[_ROW_BQKV:_ROW_BQKV + 1, :3 * H]
    bo = vec[_ROW_BO:_ROW_BO + 1, :H]
    g1 = vec[_ROW_G1:_ROW_G1 + 1, :H]
    b1 = vec[_ROW_B1:_ROW_B1 + 1, :H]
    bi = vec[_ROW_BI:_ROW_BI + 1, :I]
    b2 = vec[_ROW_B2:_ROW_B2 + 1, :H]
    g2 = vec[_ROW_G2:_ROW_G2 + 1, :H]
    b2n = vec[_ROW_B2N:_ROW_B2N + 1, :H]

    # --- BERTSelfAttention: fused QKV projection, ONE MXU push ---
    qkv = jnp.dot(x, wqkv, preferred_element_type=jnp.float32) + bqkv   # (S, 3H)
    qf = _head_rows(qkv[:, 0 * H:1 * H])                                # (R, DH)
    kf = _head_rows(qkv[:, 1 * H:2 * H])
    vf = _head_rows(qkv[:, 2 * H:3 * H])

    # attention core: ONE scores push + ONE context push; cross-head entries masked
    scores = jax.lax.dot_general(qf, kf, (((1,), (1,)), ((), ())),
                                 preferred_element_type=jnp.float32)    # (R, R)
    scores = scores + mask
    m = jnp.max(scores, axis=-1, keepdims=True)
    e = jnp.exp(scores - m)
    denom = jnp.sum(e, axis=-1, keepdims=True)
    probs = e * pl.reciprocal(denom, approx=True)   # attention dropout: eval -> identity

    ctx = jnp.dot(probs, vf, preferred_element_type=jnp.float32)        # (R, DH)

    # --- BERTSelfOutput: single K=H output projection on the merged heads ---
    ctx2d = _merge_heads(ctx)                                           # (S, H)
    attn = jnp.dot(ctx2d, wo, preferred_element_type=jnp.float32) + bo
    attn_out = _layer_norm(attn + x, g1, b1)        # hidden dropout: identity

    # --- BERTIntermediate (dense -> gelu) + BERTOutput (dense -> residual -> LN) ---
    inter = _gelu(jnp.dot(attn_out, wi, preferred_element_type=jnp.float32) + bi)
    out = jnp.dot(inter, w2, preferred_element_type=jnp.float32) + b2
    y = _layer_norm(out + attn_out, g2, b2n)

    x_scr[...] = y                         # carry hidden state to the next layer
    out_ref[0, 0] = y.astype(out_ref.dtype)   # per-layer output ("all_encoder_layers")


# ----------------------------- wrapper ---------------------------------------
@jax.jit
def _encoder_pallas(x, mask, wqkv, wo, wi, w2, vec):
    per_step_flops = int(
        2 * S * H * 3 * H            # fused QKV
        + 2 * R * R * DH * 2         # scores + context
        + 2 * S * H * H              # output projection
        + 2 * S * H * I * 2)         # FFN (wi, w2)
    flops = B * NUM_LAYERS * per_step_flops
    trans = B * NUM_LAYERS * int(R * R + S * I + R + 2 * S)   # exp, erf, recip, rsqrt
    per_layer_w = H * 3 * H + H * H + H * I + I * H + _VEC_ROWS * _VEC_COLS
    bytes_acc = 4 * (B * S * H + B * R * R
                     + B * NUM_LAYERS * per_layer_w + NUM_LAYERS * B * S * H)

    return pl.pallas_call(
        _bert_encoder_kernel,
        out_shape=jax.ShapeDtypeStruct((NUM_LAYERS, B, S, H), jnp.float32),
        grid_spec=pltpu.PrefetchScalarGridSpec(
            num_scalar_prefetch=0,
            grid=(B, NUM_LAYERS),
            in_specs=[
                pl.BlockSpec((1, S, H), lambda b, l: (b, 0, 0)),          # x (read at l==0)
                pl.BlockSpec((1, R, R), lambda b, l: (b, 0, 0)),          # head-blockdiag mask
                pl.BlockSpec((1, H, 3 * H), lambda b, l: (l, 0, 0)),      # wqkv
                pl.BlockSpec((1, H, H), lambda b, l: (l, 0, 0)),          # wo
                pl.BlockSpec((1, H, I), lambda b, l: (l, 0, 0)),          # wi
                pl.BlockSpec((1, I, H), lambda b, l: (l, 0, 0)),          # w2
                pl.BlockSpec((1, _VEC_ROWS, _VEC_COLS), lambda b, l: (l, 0, 0)),  # packed vecs
            ],
            out_specs=pl.BlockSpec((1, 1, S, H), lambda b, l: (l, b, 0, 0)),
            scratch_shapes=[pltpu.VMEM((S, H), jnp.float32)],
        ),
        compiler_params=pltpu.CompilerParams(
            # batch tiles are independent (megacore on v7x); layers carry VMEM state
            dimension_semantics=("parallel", "arbitrary"),
            vmem_limit_bytes=32 * 1024 * 1024),
        cost_estimate=pl.CostEstimate(
            flops=flops, transcendentals=trans, bytes_accessed=bytes_acc),
    )(x, mask, wqkv, wo, wi, w2, vec)


def _pack_layer(p):
    """Repack one layer's PyTorch-style params into the kernel layout."""
    s = 1.0 / math.sqrt(DH)   # fold attention scale into wq / bq
    wqkv = jnp.concatenate([p["wq"] * s, p["wk"], p["wv"]], axis=1)      # (H, 3H)
    bqkv = jnp.concatenate([p["bq"][0] * s, p["bk"][0], p["bv"][0]])     # (3H,)

    vec = jnp.zeros((_VEC_ROWS, _VEC_COLS), jnp.float32)
    vec = vec.at[_ROW_BQKV, :3 * H].set(bqkv)
    vec = vec.at[_ROW_BO, :H].set(p["bo"][0])
    vec = vec.at[_ROW_G1, :H].set(p["g1"][0])
    vec = vec.at[_ROW_B1, :H].set(p["b1"][0])
    vec = vec.at[_ROW_BI, :I].set(p["bi"][0])
    vec = vec.at[_ROW_B2, :H].set(p["b2"][0])
    vec = vec.at[_ROW_G2, :H].set(p["g2"][0])
    vec = vec.at[_ROW_B2N, :H].set(p["b2n"][0])
    return wqkv, p["wo"], p["wi"], p["w2"], vec


def _build_mask(attention_mask):
    """(B, S) additive key mask -> (B, NH*S, NH*S): per-key additive mask on the
    head-diagonal blocks, -1e9 everywhere else (kills cross-head score entries)."""
    base = jnp.broadcast_to(attention_mask[:, None, :], (B, S, S)).astype(jnp.float32)
    mask = jnp.full((B, R, R), NEG_INF, jnp.float32)
    for h in range(NH):
        mask = mask.at[:, h * S:(h + 1) * S, h * S:(h + 1) * S].set(base)
    return mask


def bert_encoder(hidden_states, attention_mask, layer_params_list):
    """Returns a list of per-layer outputs, like BERTEncoder.forward."""
    packed = [_pack_layer(p) for p in layer_params_list]
    wqkv, wo, wi, w2, vec = (jnp.stack(t) for t in zip(*packed))
    mask = _build_mask(attention_mask)
    out = _encoder_pallas(hidden_states, mask, wqkv, wo, wi, w2, vec)   # (L, B, S, H)
    return [out[l] for l in range(NUM_LAYERS)]


# ----------------------------- reference (plain JAX) --------------------------
def bert_layer_ref(x, mask, p):
    q = x @ p["wq"] + p["bq"]
    k = x @ p["wk"] + p["bk"]
    v = x @ p["wv"] + p["bv"]

    def split_heads(t):  # (B,S,H) -> (B,NH,S,DH)
        return t.reshape(B, S, NH, DH).transpose(0, 2, 1, 3)

    qh, kh, vh = split_heads(q), split_heads(k), split_heads(v)
    scores = jnp.einsum("bhqd,bhkd->bhqk", qh, kh) / math.sqrt(DH)
    scores = scores + mask[:, None, None, :]
    probs = jax.nn.softmax(scores, axis=-1)
    ctx = jnp.einsum("bhqk,bhkd->bhqd", probs, vh)
    ctx = ctx.transpose(0, 2, 1, 3).reshape(B, S, H)

    attn = ctx @ p["wo"] + p["bo"]
    attn_out = _layer_norm(attn + x, p["g1"], p["b1"])
    inter = _gelu(attn_out @ p["wi"] + p["bi"])
    out = inter @ p["w2"] + p["b2"]
    return _layer_norm(out + attn_out, p["g2"], p["b2n"])


# ----------------------------- params ----------------------------------------
def make_layer_params(key):
    ks = jax.random.split(key, 5)
    n = lambda k, shp: jax.random.normal(k, shp, jnp.float32) * 0.02
    return {
        "wq": n(ks[0], (H, H)), "bq": jnp.zeros((1, H), jnp.float32),
        "wk": n(ks[1], (H, H)), "bk": jnp.zeros((1, H), jnp.float32),
        "wv": n(ks[2], (H, H)), "bv": jnp.zeros((1, H), jnp.float32),
        "wo": n(ks[3], (H, H)), "bo": jnp.zeros((1, H), jnp.float32),
        "g1": jnp.ones((1, H), jnp.float32), "b1": jnp.zeros((1, H), jnp.float32),
        "wi": n(ks[4], (H, I)), "bi": jnp.zeros((1, I), jnp.float32),
        "w2": n(jax.random.fold_in(key, 99), (I, H)),
        "b2": jnp.zeros((1, H), jnp.float32),
        "g2": jnp.ones((1, H), jnp.float32), "b2n": jnp.zeros((1, H), jnp.float32),
    }


if __name__ == "__main__":
    key = jax.random.PRNGKey(0)
    k_x, k_p = jax.random.split(key)

    hidden_states = jax.random.normal(k_x, (B, S, H), jnp.float32)
    # additive attention mask: last 2 key positions of batch 1 masked out
    attention_mask = jnp.zeros((B, S), jnp.float32)
    attention_mask = attention_mask.at[1, -2:].set(-10000.0)

    # BERTEncoder deepcopies one BERTLayer -> all layers share identical init params
    layer_params = make_layer_params(k_p)
    layer_params_list = [layer_params for _ in range(NUM_LAYERS)]

    outs = bert_encoder(hidden_states, attention_mask, layer_params_list)
    outs = [jax.block_until_ready(o) for o in outs]

    # cross-check every layer against a plain-JAX reference of the same math
    # (tolerance 2e-3: accounts for the EUP approximate reciprocal in the softmax;
    #  real bugs produce O(0.1-1) errors on these LayerNorm-normalized outputs)
    ref = hidden_states
    for o, p in zip(outs, layer_params_list):
        ref = bert_layer_ref(ref, attention_mask, p)
        assert jnp.allclose(o, ref, rtol=2e-3, atol=2e-3), "mismatch vs reference"

    print("KERNEL_OK")
</pallas_src>

<mosaic_0001>
module attributes {stable_mosaic.version = 11 : i64} {
  func.func @_bert_encoder_kernel(%arg0: i32, %arg1: i32, %arg2: memref<1x8x64xf32, #tpu.memory_space<vmem>>, %arg3: memref<1x32x32xf32, #tpu.memory_space<vmem>>, %arg4: memref<1x64x192xf32, #tpu.memory_space<vmem>>, %arg5: memref<1x64x64xf32, #tpu.memory_space<vmem>>, %arg6: memref<1x64x128xf32, #tpu.memory_space<vmem>>, %arg7: memref<1x128x64xf32, #tpu.memory_space<vmem>>, %arg8: memref<1x8x256xf32, #tpu.memory_space<vmem>>, %arg9: memref<1x1x8x64xf32, #tpu.memory_space<vmem>>, %arg10: memref<8x64xf32, #tpu.memory_space<vmem>>) attributes {dimension_semantics = [#tpu.dimension_semantics<parallel>, #tpu.dimension_semantics<arbitrary>], iteration_bounds = array<i64: 2, 2>, scalar_prefetch = 0 : i64, scratch_operands = 1 : i64, tpu.core_type = #tpu.core_type<tc>, window_params = [{transform_indices = @transform_0, window_bounds = array<i64: 1, 8, 64>}, {transform_indices = @transform_1, window_bounds = array<i64: 1, 32, 32>}, {transform_indices = @transform_2, window_bounds = array<i64: 1, 64, 192>}, {transform_indices = @transform_3, window_bounds = array<i64: 1, 64, 64>}, {transform_indices = @transform_4, window_bounds = array<i64: 1, 64, 128>}, {transform_indices = @transform_5, window_bounds = array<i64: 1, 128, 64>}, {transform_indices = @transform_6, window_bounds = array<i64: 1, 8, 256>}, {transform_indices = @transform_7, window_bounds = array<i64: 1, 1, 8, 64>}]} {
    %c0_i32 = arith.constant 0 : i32
    %0 = arith.cmpi eq, %arg1, %c0_i32 : i32
    %1 = arith.extui %0 : i1 to i32
    %c0_i32_0 = arith.constant 0 : i32
    %2 = arith.cmpi ne, %1, %c0_i32_0 : i32
    scf.if %2 {
      %c0_46 = arith.constant 0 : index
      %c0_47 = arith.constant 0 : index
      %c0_48 = arith.constant 0 : index
      %130 = vector.load %arg2[%c0_46, %c0_47, %c0_48] : memref<1x8x64xf32, #tpu.memory_space<vmem>>, vector<1x8x64xf32>
      %131 = vector.shape_cast %130 : vector<1x8x64xf32> to vector<8x64xf32>
      %c0_49 = arith.constant 0 : index
      %c0_50 = arith.constant 0 : index
      %132 = vector.load %arg10[%c0_49, %c0_50] : memref<8x64xf32, #tpu.memory_space<vmem>>, vector<8x64xf32>
      tpu.vector_store %arg10[%c0_49, %c0_50], %131 {strides = array<i32>} : memref<8x64xf32, #tpu.memory_space<vmem>>, vector<8x64xf32>,
    } else {
    }
    %c0 = arith.constant 0 : index
    %c0_1 = arith.constant 0 : index
    %3 = vector.load %arg10[%c0, %c0_1] : memref<8x64xf32, #tpu.memory_space<vmem>>, vector<8x64xf32>
    %c0_2 = arith.constant 0 : index
    %c0_3 = arith.constant 0 : index
    %c0_4 = arith.constant 0 : index
    %4 = vector.load %arg3[%c0_2, %c0_3, %c0_4] : memref<1x32x32xf32, #tpu.memory_space<vmem>>, vector<1x32x32xf32>
    %5 = vector.shape_cast %4 : vector<1x32x32xf32> to vector<32x32xf32>
    %c0_5 = arith.constant 0 : index
    %c0_6 = arith.constant 0 : index
    %c0_7 = arith.constant 0 : index
    %6 = vector.load %arg4[%c0_5, %c0_6, %c0_7] : memref<1x64x192xf32, #tpu.memory_space<vmem>>, vector<1x64x192xf32>
    %7 = vector.shape_cast %6 : vector<1x64x192xf32> to vector<64x192xf32>
    %c0_8 = arith.constant 0 : index
    %c0_9 = arith.constant 0 : index
    %c0_10 = arith.constant 0 : index
    %8 = vector.load %arg5[%c0_8, %c0_9, %c0_10] : memref<1x64x64xf32, #tpu.memory_space<vmem>>, vector<1x64x64xf32>
    %9 = vector.shape_cast %8 : vector<1x64x64xf32> to vector<64x64xf32>
    %c0_11 = arith.constant 0 : index
    %c0_12 = arith.constant 0 : index
    %c0_13 = arith.constant 0 : index
    %10 = vector.load %arg6[%c0_11, %c0_12, %c0_13] : memref<1x64x128xf32, #tpu.memory_space<vmem>>, vector<1x64x128xf32>
    %11 = vector.shape_cast %10 : vector<1x64x128xf32> to vector<64x128xf32>
    %c0_14 = arith.constant 0 : index
    %c0_15 = arith.constant 0 : index
    %c0_16 = arith.constant 0 : index
    %12 = vector.load %arg7[%c0_14, %c0_15, %c0_16] : memref<1x128x64xf32, #tpu.memory_space<vmem>>, vector<1x128x64xf32>
    %13 = vector.shape_cast %12 : vector<1x128x64xf32> to vector<128x64xf32>
    %c0_17 = arith.constant 0 : index
    %c0_18 = arith.constant 0 : index
    %c0_19 = arith.constant 0 : index
    %14 = vector.load %arg8[%c0_17, %c0_18, %c0_19] : memref<1x8x256xf32, #tpu.memory_space<vmem>>, vector<1x8x256xf32>
    %15 = vector.shape_cast %14 : vector<1x8x256xf32> to vector<8x256xf32>
    %16 = vector.extract_strided_slice %15 {offsets = [0, 0], sizes = [1, 192], strides = [1, 1]} : vector<8x256xf32> to vector<1x192xf32>
    %17 = vector.extract_strided_slice %15 {offsets = [1, 0], sizes = [1, 64], strides = [1, 1]} : vector<8x256xf32> to vector<1x64xf32>
    %18 = vector.extract_strided_slice %15 {offsets = [2, 0], sizes = [1, 64], strides = [1, 1]} : vector<8x256xf32> to vector<1x64xf32>
    %19 = vector.extract_strided_slice %15 {offsets = [3, 0], sizes = [1, 64], strides = [1, 1]} : vector<8x256xf32> to vector<1x64xf32>
    %20 = vector.extract_strided_slice %15 {offsets = [4, 0], sizes = [1, 128], strides = [1, 1]} : vector<8x256xf32> to vector<1x128xf32>
    %21 = vector.extract_strided_slice %15 {offsets = [5, 0], sizes = [1, 64], strides = [1, 1]} : vector<8x256xf32> to vector<1x64xf32>
    %22 = vector.extract_strided_slice %15 {offsets = [6, 0], sizes = [1, 64], strides = [1, 1]} : vector<8x256xf32> to vector<1x64xf32>
    %23 = vector.extract_strided_slice %15 {offsets = [7, 0], sizes = [1, 64], strides = [1, 1]} : vector<8x256xf32> to vector<1x64xf32>
    %cst = arith.constant dense<0.000000e+00> : vector<8x192xf32>
    %24 = tpu.matmul %3, %7, %cst {dimension_numbers = #tpu.dot_dimension_numbers<[1], [0], [0], [1], [0, 0, 1, 1], [], []>} : vector<8x64xf32>, vector<64x192xf32>, vector<8x192xf32> -> vector<8x192xf32>
    %25 = vector.broadcast %16 : vector<1x192xf32> to vector<8x192xf32>
    %26 = arith.addf %24, %25 : vector<8x192xf32>
    %27 = vector.extract_strided_slice %26 {offsets = [0, 0], sizes = [8, 64], strides = [1, 1]} : vector<8x192xf32> to vector<8x64xf32>
    %28 = vector.extract_strided_slice %27 {offsets = [0, 0], sizes = [8, 16], strides = [1, 1]} : vector<8x64xf32> to vector<8x16xf32>
    %29 = vector.extract_strided_slice %27 {offsets = [0, 16], sizes = [8, 16], strides = [1, 1]} : vector<8x64xf32> to vector<8x16xf32>
    %30 = vector.extract_strided_slice %27 {offsets = [0, 32], sizes = [8, 16], strides = [1, 1]} : vector<8x64xf32> to vector<8x16xf32>
    %31 = vector.extract_strided_slice %27 {offsets = [0, 48], sizes = [8, 16], strides = [1, 1]} : vector<8x64xf32> to vector<8x16xf32>
    %32 = tpu.concatenate %28, %29, %30, %31 in 0 : vector<8x16xf32>, vector<8x16xf32>, vector<8x16xf32>, vector<8x16xf32> -> vector<32x16xf32>
    %33 = vector.extract_strided_slice %26 {offsets = [0, 64], sizes = [8, 64], strides = [1, 1]} : vector<8x192xf32> to vector<8x64xf32>
    %34 = vector.extract_strided_slice %33 {offsets = [0, 0], sizes = [8, 16], strides = [1, 1]} : vector<8x64xf32> to vector<8x16xf32>
    %35 = vector.extract_strided_slice %33 {offsets = [0, 16], sizes = [8, 16], strides = [1, 1]} : vector<8x64xf32> to vector<8x16xf32>
    %36 = vector.extract_strided_slice %33 {offsets = [0, 32], sizes = [8, 16], strides = [1, 1]} : vector<8x64xf32> to vector<8x16xf32>
    %37 = vector.extract_strided_slice %33 {offsets = [0, 48], sizes = [8, 16], strides = [1, 1]} : vector<8x64xf32> to vector<8x16xf32>
    %38 = tpu.concatenate %34, %35, %36, %37 in 0 : vector<8x16xf32>, vector<8x16xf32>, vector<8x16xf32>, vector<8x16xf32> -> vector<32x16xf32>
    %39 = vector.extract_strided_slice %26 {offsets = [0, 128], sizes = [8, 64], strides = [1, 1]} : vector<8x192xf32> to vector<8x64xf32>
    %40 = vector.extract_strided_slice %39 {offsets = [0, 0], sizes = [8, 16], strides = [1, 1]} : vector<8x64xf32> to vector<8x16xf32>
    %41 = vector.extract_strided_slice %39 {offsets = [0, 16], sizes = [8, 16], strides = [1, 1]} : vector<8x64xf32> to vector<8x16xf32>
    %42 = vector.extract_strided_slice %39 {offsets = [0, 32], sizes = [8, 16], strides = [1, 1]} : vector<8x64xf32> to vector<8x16xf32>
    %43 = vector.extract_strided_slice %39 {offsets = [0, 48], sizes = [8, 16], strides = [1, 1]} : vector<8x64xf32> to vector<8x16xf32>
    %44 = tpu.concatenate %40, %41, %42, %43 in 0 : vector<8x16xf32>, vector<8x16xf32>, vector<8x16xf32>, vector<8x16xf32> -> vector<32x16xf32>
    %cst_20 = arith.constant dense<0.000000e+00> : vector<32x32xf32>
    %45 = tpu.matmul %32, %38, %cst_20 {dimension_numbers = #tpu.dot_dimension_numbers<[1], [1], [0], [0], [0, 0, 1, 0], [], []>} : vector<32x16xf32>, vector<32x16xf32>, vector<32x32xf32> -> vector<32x32xf32>
    %46 = arith.addf %45, %5 : vector<32x32xf32>
    %cst_21 = arith.constant dense<0xFF800000> : vector<32xf32>
    %47 = vector.multi_reduction <maximumf>, %46, %cst_21 [1] : vector<32x32xf32> to vector<32xf32>
    %48 = vector.shape_cast %47 : vector<32xf32> to vector<32x1xf32>
    %49 = vector.broadcast %48 : vector<32x1xf32> to vector<32x32xf32>
    %50 = arith.subf %46, %49 : vector<32x32xf32>
    %51 = math.exp %50 : vector<32x32xf32>
    %cst_22 = arith.constant dense<0.000000e+00> : vector<32xf32>
    %52 = vector.multi_reduction <add>, %51, %cst_22 [1] : vector<32x32xf32> to vector<32xf32>
    %53 = vector.shape_cast %52 : vector<32xf32> to vector<32x1xf32>
    %54 = tpu.reciprocal %53 {approx = true} : vector<32x1xf32> -> vector<32x1xf32>
    %55 = vector.broadcast %54 : vector<32x1xf32> to vector<32x32xf32>
    %56 = arith.mulf %51, %55 : vector<32x32xf32>
    %cst_23 = arith.constant dense<0.000000e+00> : vector<32x16xf32>
    %57 = tpu.matmul %56, %44, %cst_23 {dimension_numbers = #tpu.dot_dimension_numbers<[1], [0], [0], [1], [0, 0, 1, 1], [], []>} : vector<32x32xf32>, vector<32x16xf32>, vector<32x16xf32> -> vector<32x16xf32>
    %58 = vector.extract_strided_slice %57 {offsets = [0, 0], sizes = [8, 16], strides = [1, 1]} : vector<32x16xf32> to vector<8x16xf32>
    %59 = vector.extract_strided_slice %57 {offsets = [8, 0], sizes = [8, 16], strides = [1, 1]} : vector<32x16xf32> to vector<8x16xf32>
    %60 = vector.extract_strided_slice %57 {offsets = [16, 0], sizes = [8, 16], strides = [1, 1]} : vector<32x16xf32> to vector<8x16xf32>
    %61 = vector.extract_strided_slice %57 {offsets = [24, 0], sizes = [8, 16], strides = [1, 1]} : vector<32x16xf32> to vector<8x16xf32>
    %62 = tpu.concatenate %58, %59, %60, %61 in 1 : vector<8x16xf32>, vector<8x16xf32>, vector<8x16xf32>, vector<8x16xf32> -> vector<8x64xf32>
    %cst_24 = arith.constant dense<0.000000e+00> : vector<8x64xf32>
    %63 = tpu.matmul %62, %9, %cst_24 {dimension_numbers = #tpu.dot_dimension_numbers<[1], [0], [0], [1], [0, 0, 1, 1], [], []>} : vector<8x64xf32>, vector<64x64xf32>, vector<8x64xf32> -> vector<8x64xf32>
    %64 = vector.broadcast %17 : vector<1x64xf32> to vector<8x64xf32>
    %65 = arith.addf %63, %64 : vector<8x64xf32>
    %66 = arith.addf %65, %3 : vector<8x64xf32>
    %cst_25 = arith.constant dense<0.000000e+00> : vector<8xf32>
    %67 = vector.multi_reduction <add>, %66, %cst_25 [1] : vector<8x64xf32> to vector<8xf32>
    %68 = vector.shape_cast %67 : vector<8xf32> to vector<8x1xf32>
    %cst_26 = arith.constant 6.400000e+01 : f32
    %69 = vector.broadcast %cst_26 : f32 to vector<8x1xf32>
    %70 = arith.divf %68, %69 : vector<8x1xf32>
    %71 = vector.broadcast %70 : vector<8x1xf32> to vector<8x64xf32>
    %72 = arith.subf %66, %71 : vector<8x64xf32>
    %73 = arith.mulf %72, %72 : vector<8x64xf32>
    %cst_27 = arith.constant dense<0.000000e+00> : vector<8xf32>
    %74 = vector.multi_reduction <add>, %73, %cst_27 [1] : vector<8x64xf32> to vector<8xf32>
    %75 = vector.shape_cast %74 : vector<8xf32> to vector<8x1xf32>
    %cst_28 = arith.constant 6.400000e+01 : f32
    %76 = vector.broadcast %cst_28 : f32 to vector<8x1xf32>
    %77 = arith.divf %75, %76 : vector<8x1xf32>
    %78 = vector.broadcast %70 : vector<8x1xf32> to vector<8x64xf32>
    %79 = arith.subf %66, %78 : vector<8x64xf32>
    %cst_29 = arith.constant 9.99999996E-13 : f32
    %80 = vector.broadcast %cst_29 : f32 to vector<8x1xf32>
    %81 = arith.addf %77, %80 : vector<8x1xf32>
    %82 = math.rsqrt %81 : vector<8x1xf32>
    %83 = vector.broadcast %82 : vector<8x1xf32> to vector<8x64xf32>
    %84 = arith.mulf %79, %83 : vector<8x64xf32>
    %85 = vector.broadcast %18 : vector<1x64xf32> to vector<8x64xf32>
    %86 = arith.mulf %85, %84 : vector<8x64xf32>
    %87 = vector.broadcast %19 : vector<1x64xf32> to vector<8x64xf32>
    %88 = arith.addf %86, %87 : vector<8x64xf32>
    %cst_30 = arith.constant dense<0.000000e+00> : vector<8x128xf32>
    %89 = tpu.matmul %88, %11, %cst_30 {dimension_numbers = #tpu.dot_dimension_numbers<[1], [0], [0], [1], [0, 0, 1, 1], [], []>} : vector<8x64xf32>, vector<64x128xf32>, vector<8x128xf32> -> vector<8x128xf32>
    %90 = vector.broadcast %20 : vector<1x128xf32> to vector<8x128xf32>
    %91 = arith.addf %89, %90 : vector<8x128xf32>
    %cst_31 = arith.constant 5.000000e-01 : f32
    %92 = vector.broadcast %cst_31 : f32 to vector<8x128xf32>
    %93 = arith.mulf %91, %92 : vector<8x128xf32>
    %cst_32 = arith.constant 1.41421354 : f32
    %94 = vector.broadcast %cst_32 : f32 to vector<8x128xf32>
    %95 = arith.divf %91, %94 : vector<8x128xf32>
    %96 = math.erf %95 : vector<8x128xf32>
    %cst_33 = arith.constant 1.000000e+00 : f32
    %97 = vector.broadcast %cst_33 : f32 to vector<8x128xf32>
    %98 = arith.addf %97, %96 : vector<8x128xf32>
    %99 = arith.mulf %93, %98 : vector<8x128xf32>
    %cst_34 = arith.constant dense<0.000000e+00> : vector<8x64xf32>
    %100 = tpu.matmul %99, %13, %cst_34 {dimension_numbers = #tpu.dot_dimension_numbers<[1], [0], [0], [1], [0, 0, 1, 1], [], []>} : vector<8x128xf32>, vector<128x64xf32>, vector<8x64xf32> -> vector<8x64xf32>
    %101 = vector.broadcast %21 : vector<1x64xf32> to vector<8x64xf32>
    %102 = arith.addf %100, %101 : vector<8x64xf32>
    %103 = arith.addf %102, %88 : vector<8x64xf32>
    %cst_35 = arith.constant dense<0.000000e+00> : vector<8xf32>
    %104 = vector.multi_reduction <add>, %103, %cst_35 [1] : vector<8x64xf32> to vector<8xf32>
    %105 = vector.shape_cast %104 : vector<8xf32> to vector<8x1xf32>
    %cst_36 = arith.constant 6.400000e+01 : f32
    %106 = vector.broadcast %cst_36 : f32 to vector<8x1xf32>
    %107 = arith.divf %105, %106 : vector<8x1xf32>
    %108 = vector.broadcast %107 : vector<8x1xf32> to vector<8x64xf32>
    %109 = arith.subf %103, %108 : vector<8x64xf32>
    %110 = arith.mulf %109, %109 : vector<8x64xf32>
    %cst_37 = arith.constant dense<0.000000e+00> : vector<8xf32>
    %111 = vector.multi_reduction <add>, %110, %cst_37 [1] : vector<8x64xf32> to vector<8xf32>
    %112 = vector.shape_cast %111 : vector<8xf32> to vector<8x1xf32>
    %cst_38 = arith.constant 6.400000e+01 : f32
    %113 = vector.broadcast %cst_38 : f32 to vector<8x1xf32>
    %114 = arith.divf %112, %113 : vector<8x1xf32>
    %115 = vector.broadcast %107 : vector<8x1xf32> to vector<8x64xf32>
    %116 = arith.subf %103, %115 : vector<8x64xf32>
    %cst_39 = arith.constant 9.99999996E-13 : f32
    %117 = vector.broadcast %cst_39 : f32 to vector<8x1xf32>
    %118 = arith.addf %114, %117 : vector<8x1xf32>
    %119 = math.rsqrt %118 : vector<8x1xf32>
    %120 = vector.broadcast %119 : vector<8x1xf32> to vector<8x64xf32>
    %121 = arith.mulf %116, %120 : vector<8x64xf32>
    %122 = vector.broadcast %22 : vector<1x64xf32> to vector<8x64xf32>
    %123 = arith.mulf %122, %121 : vector<8x64xf32>
    %124 = vector.broadcast %23 : vector<1x64xf32> to vector<8x64xf32>
    %125 = arith.addf %123, %124 : vector<8x64xf32>
    %c0_40 = arith.constant 0 : index
    %c0_41 = arith.constant 0 : index
    %126 = vector.load %arg10[%c0_40, %c0_41] : memref<8x64xf32, #tpu.memory_space<vmem>>, vector<8x64xf32>
    tpu.vector_store %arg10[%c0_40, %c0_41], %125 {strides = array<i32>} : memref<8x64xf32, #tpu.memory_space<vmem>>, vector<8x64xf32>,
    %c0_42 = arith.constant 0 : index
    %c0_43 = arith.constant 0 : index
    %c0_44 = arith.constant 0 : index
    %c0_45 = arith.constant 0 : index
    %127 = vector.load %arg9[%c0_42, %c0_43, %c0_44, %c0_45] : memref<1x1x8x64xf32, #tpu.memory_space<vmem>>, vector<1x1x8x64xf32>
    %128 = vector.shape_cast %127 : vector<1x1x8x64xf32> to vector<8x64xf32>
    %129 = vector.shape_cast %125 : vector<8x64xf32> to vector<1x1x8x64xf32>
    tpu.vector_store %arg9[%c0_42, %c0_43, %c0_44, %c0_45], %129 {strides = array<i32>} : memref<1x1x8x64xf32, #tpu.memory_space<vmem>>, vector<1x1x8x64xf32>,
    return
  }
  func.func @transform_0(%arg0: i32, %arg1: i32) -> (i32, i32, i32) {
    %c0_i32 = arith.constant 0 : i32
    %c0_i32_0 = arith.constant 0 : i32
    %c0_i32_1 = arith.constant 0 : i32
    return %arg0, %c0_i32, %c0_i32_0 : i32, i32, i32
  }
  func.func @transform_1(%arg0: i32, %arg1: i32) -> (i32, i32, i32) {
    %c0_i32 = arith.constant 0 : i32
    %c0_i32_0 = arith.constant 0 : i32
    %c0_i32_1 = arith.constant 0 : i32
    return %arg0, %c0_i32, %c0_i32_0 : i32, i32, i32
  }
  func.func @transform_2(%arg0: i32, %arg1: i32) -> (i32, i32, i32) {
    %c0_i32 = arith.constant 0 : i32
    %c0_i32_0 = arith.constant 0 : i32
    %c0_i32_1 = arith.constant 0 : i32
    return %arg1, %c0_i32, %c0_i32_0 : i32, i32, i32
  }
  func.func @transform_3(%arg0: i32, %arg1: i32) -> (i32, i32, i32) {
    %c0_i32 = arith.constant 0 : i32
    %c0_i32_0 = arith.constant 0 : i32
    %c0_i32_1 = arith.constant 0 : i32
    return %arg1, %c0_i32, %c0_i32_0 : i32, i32, i32
  }
  func.func @transform_4(%arg0: i32, %arg1: i32) -> (i32, i32, i32) {
    %c0_i32 = arith.constant 0 : i32
    %c0_i32_0 = arith.constant 0 : i32
    %c0_i32_1 = arith.constant 0 : i32
    return %arg1, %c0_i32, %c0_i32_0 : i32, i32, i32
  }
  func.func @transform_5(%arg0: i32, %arg1: i32) -> (i32, i32, i32) {
    %c0_i32 = arith.constant 0 : i32
    %c0_i32_0 = arith.constant 0 : i32
    %c0_i32_1 = arith.constant 0 : i32
    return %arg1, %c0_i32, %c0_i32_0 : i32, i32, i32
  }
  func.func @transform_6(%arg0: i32, %arg1: i32) -> (i32, i32, i32) {
    %c0_i32 = arith.constant 0 : i32
    %c0_i32_0 = arith.constant 0 : i32
    %c0_i32_1 = arith.constant 0 : i32
    return %arg1, %c0_i32, %c0_i32_0 : i32, i32, i32
  }
  func.func @transform_7(%arg0: i32, %arg1: i32) -> (i32, i32, i32, i32) {
    %c0_i32 = arith.constant 0 : i32
    %c0_i32_0 = arith.constant 0 : i32
    %c0_i32_1 = arith.constant 0 : i32
    return %arg1, %arg0, %c0_i32, %c0_i32_0 : i32, i32, i32, i32
  }
}

</mosaic_0001>

<llo_original>
// kernel: _encoder_pallas.1
$region0: #{_encoder_pallas.1}
  #allocation0 [shape = 'u32[]', space=smem, size = 0x4, offset = 0x4, fixed_abs, tag = 'smem constant byte address 0x4 - core index']
  #allocation1 [shape = 'u32[144,128]{1,0:T(1,128)}', space=vmem, size = 0x12000, scoped, tag = 'internal scratch']
  #allocation2 [shape = 'f32[8,64]{1,0:T(8,128)}', space=vmem, size = 0x1000, scoped, tag = 'scratch operand']
  %s0 = inlined_call_operand.hbm [shape: f32[2,8,64], index: 0, kind: input, shape index: {}]
  %s1 = inlined_call_operand.hbm [shape: f32[2,32,32], index: 1, kind: input, shape index: {}]
  %s2 = inlined_call_operand.vmem [shape: f32[2,64,192], index: 2, kind: input, shape index: {}]
  %s3 = inlined_call_operand.vmem [shape: f32[2,64,64], index: 3, kind: input, shape index: {}]
  %s4 = inlined_call_operand.hbm [shape: f32[2,64,128], index: 4, kind: input, shape index: {}]
  %s5 = inlined_call_operand.vmem [shape: f32[2,128,64], index: 5, kind: input, shape index: {}]
  %s6 = inlined_call_operand.hbm [shape: f32[2,8,256], index: 6, kind: input, shape index: {}]
  %s7 = inlined_call_operand.hbm [shape: f32[2,2,8,64], index: 7, kind: output, shape index: {}]
  %s8 = sld [smem:[#allocation0]]
  $region81: #{_encoder_pallas.1} parent=0
    _
  %s10 = ssub.s32 1, %s8
  %s11 = scalar_select 0, %s10, %s8
  $region1: #{_encoder_pallas.1} parent=0
    #allocation3 [shape = 'u8[8192]{0}', space=vmem, size = 0x2000, scoped, tag = 'input window, operand 0']
    #allocation4 [shape = 's32[2]{0}', space=sflag, size = 0x8, scoped, tag = 'scoped memory for _encoder_pallas.1']
    #allocation5 [shape = 's32[2]{0}', space=sflag, size = 0x8, scoped, tag = 'scoped memory for _encoder_pallas.1']
    #allocation6 [shape = 'u8[32768]{0}', space=vmem, size = 0x8000, scoped, tag = 'input window, operand 1']
    #allocation7 [shape = 's32[2]{0}', space=sflag, size = 0x8, scoped, tag = 'scoped memory for _encoder_pallas.1']
    #allocation8 [shape = 'u8[65536]{0}', space=vmem, size = 0x10000, scoped, tag = 'input window, operand 4']
    #allocation9 [shape = 'u8[16384]{0}', space=vmem, size = 0x4000, scoped, tag = 'input window, operand 6']
    #allocation10 [shape = 's32[2]{0}', space=sflag, size = 0x8, scoped, tag = 'scoped memory for _encoder_pallas.1']
    #allocation11 [shape = 'u8[8192]{0}', space=vmem, size = 0x2000, scoped, tag = 'output window, operand 0']
    %12 = vsyncpa [#allocation4], 0
    %s13 = scalar_lea.sflag [#allocation4], 1
    %14 = vsyncpa %s13, 0
    %15 = vsyncpa [#allocation7], 0
    %s16 = scalar_lea.sflag [#allocation7], 1
    %17 = vsyncpa %s16, 0
    %18 = vsyncpa [#allocation10], 0
    %s19 = scalar_lea.sflag [#allocation10], 1
    %20 = vsyncpa %s19, 0
    %21 = vsyncpa [#allocation5], 0
    %s22 = scalar_lea.sflag [#allocation5], 1
    %23 = vsyncpa %s22, 0
    loop: start=0, step=1, limit=6
    $region2: #{_encoder_pallas.1} parent=1 // loop_pre_header
      _
    $region3: #{_encoder_pallas.1} parent=1 // loop_header
      %s25 = sphi 0, %s29
      %p26 = scmp.ge.s32.totalorder %s25, 6
      %s32 = sphi 0, %s44
      %s33 = sphi 0, %s40
      %s34 = sphi 0, %s32
      %s35 = sphi 0, %s33
      %s36 = sphi 0, %s34
      %s37 = sphi 0, %s35
      %s47 = sphi 0, %s49
      %s50 = sphi 0, %s47
      %s51 = sphi 0, %s50
      %s67 = sphi 0, %s51
      %s73 = sphi 0, %s75
      %s76 = sphi 0, %s73
      %s77 = sphi 0, %s76
      %s93 = sphi 0, %s77
      %s99 = sphi 0, %s101
      %s102 = sphi 0, %s99
      %s103 = sphi 0, %s102
      %s119 = sphi 0, %s103
      %s125 = sphi 0, %s127
      %s128 = sphi 0, %s125
      %s129 = sphi 0, %s128
      %s145 = sphi 0, %s129
      %s151 = sphi 0, %s153
      %s154 = sphi 0, %s151
      %s155 = sphi 0, %s154
      %s171 = sphi 0, %s155
      %s177 = sphi 0, %s179
      %s180 = sphi 0, %s177
      %s181 = sphi 0, %s180
      %s197 = sphi 0, %s181
      %s203 = sphi 0, %s205
      %s206 = sphi 0, %s203
      %s207 = sphi 0, %s206
      %s223 = sphi 0, %s207
      %s231 = sphi 0, %s233
      %s234 = sphi 0, %s231
      %s235 = sphi 0, %s234
      %s251 = sphi 0, %s235
    $region4: #{_encoder_pallas.1} parent=1 // loop_header_branch
      %28 = sbr.rel (%p26) target = $region8
    $region5: #{_encoder_pallas.1} parent=1 // loop_body
      %s30 = ssub.s32 %s25, 1
      %s31 = ssub.s32 %s25, 2
      %s38 = sadd.s32 1, %s33
      %p39 = scmp.ge.s32.totalorder %s38, 2
      %s40 = scalar_select %p39, 0, %s38
      %s41 = sadd.s32 1, %s32
      %s42 = scalar_select %p39, %s41, %s32
      %p43 = scmp.ge.s32.totalorder %s42, 2
      %s44 = scalar_select %p43, 0, %s42
      %s45 = ssub.s32 %s32, %s44
      %p46 = scmp.eq.s32.totalorder %s45, 0
      %s48 = sadd.s32 %s47, 1
      %s49 = scalar_select %p46, %s47, %s48
      %p52 = pneg %p46
      %p53 = scmp.eq.s32.totalorder %s25, 3
      %p54 = por %p52, %p53
      %p55 = scmp.ne.s32.totalorder %s47, %s50
      %p56 = scmp.eq.s32.totalorder %s25, 0
      %p57 = por %p55, %p56
      %p58 = scmp.ne.s32.totalorder %s47, %s50
      %p59 = scmp.eq.s32.totalorder %s30, 3
      %p60 = por %p58, %p59
      %p61 = scmp.ne.s32.totalorder %s50, %s51
      %p62 = scmp.eq.s32.totalorder %s30, 0
      %p63 = por %p61, %p62
      %p64 = scmp.ne.s32.totalorder %s50, %s51
      %p65 = scmp.eq.s32.totalorder %s31, 3
      %p66 = por %p64, %p65
      %p68 = scmp.ne.s32.totalorder %s51, %s67
      %p69 = scmp.eq.s32.totalorder %s31, 0
      %p70 = por %p68, %p69
      %s71 = ssub.s32 %s32, %s44
      %p72 = scmp.eq.s32.totalorder %s71, 0
      %s74 = sadd.s32 %s73, 1
      %s75 = scalar_select %p72, %s73, %s74
      %p78 = pneg %p72
      %p79 = scmp.eq.s32.totalorder %s25, 3
      %p80 = por %p78, %p79
      %p81 = scmp.ne.s32.totalorder %s73, %s76
      %p82 = scmp.eq.s32.totalorder %s25, 0
      %p83 = por %p81, %p82
      %p84 = scmp.ne.s32.totalorder %s73, %s76
      %p85 = scmp.eq.s32.totalorder %s30, 3
      %p86 = por %p84, %p85
      %p87 = scmp.ne.s32.totalorder %s76, %s77
      %p88 = scmp.eq.s32.totalorder %s30, 0
      %p89 = por %p87, %p88
      %p90 = scmp.ne.s32.totalorder %s76, %s77
      %p91 = scmp.eq.s32.totalorder %s31, 3
      %p92 = por %p90, %p91
      %p94 = scmp.ne.s32.totalorder %s77, %s93
      %p95 = scmp.eq.s32.totalorder %s31, 0
      %p96 = por %p94, %p95
      %s97 = ssub.s32 %s33, %s40
      %p98 = scmp.eq.s32.totalorder %s97, 0
      %s100 = sadd.s32 %s99, 1
      %s101 = scalar_select %p98, %s99, %s100
      %p104 = pneg %p98
      %p105 = scmp.eq.s32.totalorder %s25, 3
      %p106 = por %p104, %p105
      %p107 = scmp.ne.s32.totalorder %s99, %s102
      %p108 = scmp.eq.s32.totalorder %s25, 0
      %p109 = por %p107, %p108
      %p110 = scmp.ne.s32.totalorder %s99, %s102
      %p111 = scmp.eq.s32.totalorder %s30, 3
      %p112 = por %p110, %p111
      %p113 = scmp.ne.s32.totalorder %s102, %s103
      %p114 = scmp.eq.s32.totalorder %s30, 0
      %p115 = por %p113, %p114
      %p116 = scmp.ne.s32.totalorder %s102, %s103
      %p117 = scmp.eq.s32.totalorder %s31, 3
      %p118 = por %p116, %p117
      %p120 = scmp.ne.s32.totalorder %s103, %s119
      %p121 = scmp.eq.s32.totalorder %s31, 0
      %p122 = por %p120, %p121
      %s123 = ssub.s32 %s33, %s40
      %p124 = scmp.eq.s32.totalorder %s123, 0
      %s126 = sadd.s32 %s125, 1
      %s127 = scalar_select %p124, %s125, %s126
      %p130 = pneg %p124
      %p131 = scmp.eq.s32.totalorder %s25, 3
      %p132 = por %p130, %p131
      %p133 = scmp.ne.s32.totalorder %s125, %s128
      %p134 = scmp.eq.s32.totalorder %s25, 0
      %p135 = por %p133, %p134
      %p136 = scmp.ne.s32.totalorder %s125, %s128
      %p137 = scmp.eq.s32.totalorder %s30, 3
      %p138 = por %p136, %p137
      %p139 = scmp.ne.s32.totalorder %s128, %s129
      %p140 = scmp.eq.s32.totalorder %s30, 0
      %p141 = por %p139, %p140
      %p142 = scmp.ne.s32.totalorder %s128, %s129
      %p143 = scmp.eq.s32.totalorder %s31, 3
      %p144 = por %p142, %p143
      %p146 = scmp.ne.s32.totalorder %s129, %s145
      %p147 = scmp.eq.s32.totalorder %s31, 0
      %p148 = por %p146, %p147
      %s149 = ssub.s32 %s33, %s40
      %p150 = scmp.eq.s32.totalorder %s149, 0
      %s152 = sadd.s32 %s151, 1
      %s153 = scalar_select %p150, %s151, %s152
      %p156 = pneg %p150
      %p157 = scmp.eq.s32.totalorder %s25, 3
      %p158 = por %p156, %p157
      %p159 = scmp.ne.s32.totalorder %s151, %s154
      %p160 = scmp.eq.s32.totalorder %s25, 0
      %p161 = por %p159, %p160
      %p162 = scmp.ne.s32.totalorder %s151, %s154
      %p163 = scmp.eq.s32.totalorder %s30, 3
      %p164 = por %p162, %p163
      %p165 = scmp.ne.s32.totalorder %s154, %s155
      %p166 = scmp.eq.s32.totalorder %s30, 0
      %p167 = por %p165, %p166
      %p168 = scmp.ne.s32.totalorder %s154, %s155
      %p169 = scmp.eq.s32.totalorder %s31, 3
      %p170 = por %p168, %p169
      %p172 = scmp.ne.s32.totalorder %s155, %s171
      %p173 = scmp.eq.s32.totalorder %s31, 0
      %p174 = por %p172, %p173
      %s175 = ssub.s32 %s33, %s40
      %p176 = scmp.eq.s32.totalorder %s175, 0
      %s178 = sadd.s32 %s177, 1
      %s179 = scalar_select %p176, %s177, %s178
      %p182 = pneg %p176
      %p183 = scmp.eq.s32.totalorder %s25, 3
      %p184 = por %p182, %p183
      %p185 = scmp.ne.s32.totalorder %s177, %s180
      %p186 = scmp.eq.s32.totalorder %s25, 0
      %p187 = por %p185, %p186
      %p188 = scmp.ne.s32.totalorder %s177, %s180
      %p189 = scmp.eq.s32.totalorder %s30, 3
      %p190 = por %p188, %p189
      %p191 = scmp.ne.s32.totalorder %s180, %s181
      %p192 = scmp.eq.s32.totalorder %s30, 0
      %p193 = por %p191, %p192
      %p194 = scmp.ne.s32.totalorder %s180, %s181
      %p195 = scmp.eq.s32.totalorder %s31, 3
      %p196 = por %p194, %p195
      %p198 = scmp.ne.s32.totalorder %s181, %s197
      %p199 = scmp.eq.s32.totalorder %s31, 0
      %p200 = por %p198, %p199
      %s201 = ssub.s32 %s33, %s40
      %p202 = scmp.eq.s32.totalorder %s201, 0
      %s204 = sadd.s32 %s203, 1
      %s205 = scalar_select %p202, %s203, %s204
      %p208 = pneg %p202
      %p209 = scmp.eq.s32.totalorder %s25, 3
      %p210 = por %p208, %p209
      %p211 = scmp.ne.s32.totalorder %s203, %s206
      %p212 = scmp.eq.s32.totalorder %s25, 0
      %p213 = por %p211, %p212
      %p214 = scmp.ne.s32.totalorder %s203, %s206
      %p215 = scmp.eq.s32.totalorder %s30, 3
      %p216 = por %p214, %p215
      %p217 = scmp.ne.s32.totalorder %s206, %s207
      %p218 = scmp.eq.s32.totalorder %s30, 0
      %p219 = por %p217, %p218
      %p220 = scmp.ne.s32.totalorder %s206, %s207
      %p221 = scmp.eq.s32.totalorder %s31, 3
      %p222 = por %p220, %p221
      %p224 = scmp.ne.s32.totalorder %s207, %s223
      %p225 = scmp.eq.s32.totalorder %s31, 0
      %p226 = por %p224, %p225
      %s227 = ssub.s32 %s33, %s40
      %s228 = ssub.s32 %s32, %s44
      %s229 = sor.u32 %s227, %s228
      %p230 = scmp.eq.s32.totalorder %s229, 0
      %s232 = sadd.s32 %s231, 1
      %s233 = scalar_select %p230, %s231, %s232
      %p236 = pneg %p230
      %p237 = scmp.eq.s32.totalorder %s25, 3
      %p238 = por %p236, %p237
      %p239 = scmp.ne.s32.totalorder %s231, %s234
      %p240 = scmp.eq.s32.totalorder %s25, 0
      %p241 = por %p239, %p240
      %p242 = scmp.ne.s32.totalorder %s231, %s234
      %p243 = scmp.eq.s32.totalorder %s30, 3
      %p244 = por %p242, %p243
      %p245 = scmp.ne.s32.totalorder %s234, %s235
      %p246 = scmp.eq.s32.totalorder %s30, 0
      %p247 = por %p245, %p246
      %p248 = scmp.ne.s32.totalorder %s234, %s235
      %p249 = scmp.eq.s32.totalorder %s31, 3
      %p250 = por %p248, %p249
      %p252 = scmp.ne.s32.totalorder %s235, %s251
      %p253 = scmp.eq.s32.totalorder %s31, 0
      %p254 = por %p252, %p253
      %p255 = scmp.le.s32.totalorder 1, %s25
      %p256 = scmp.lt.s32.totalorder %s25, 5
      %p257 = pnand %p255, %p256
      %p258 = pneg %p257
      // Predicated region
      $region9: #{_encoder_pallas.1} parent=5 // pred_check
        _
      $region10: #{_encoder_pallas.1} parent=5 // pred_check_branch
        %260 = sbr.rel (%p257) target = $region12
      $region11: #{_encoder_pallas.1} parent=5 // pred_region
        %s261 = ssub.s32 %s25, 1
      $region12: #{_encoder_pallas.1} parent=5 // pred_fallthru
        _
      %p262 = scmp.lt.s32.totalorder %s25, 4
      // Predicated region
      $region13: #{_encoder_pallas.1} parent=5 // pred_check
        %p263 = pneg %p262
      $region14: #{_encoder_pallas.1} parent=5 // pred_check_branch
        %265 = sbr.rel (%p263) target = $region16
      $region15: #{_encoder_pallas.1} parent=5 // pred_region
        // Predicated region
        $region17: #{_encoder_pallas.1} parent=15 // pred_check
          %p266 = pneg %p57
        $region18: #{_encoder_pallas.1} parent=15 // pred_check_branch
          %268 = sbr.rel (%p266) target = $region20
        $region19: #{_encoder_pallas.1} parent=15 // pred_region
          %s269 = sand.u32 %s47, 1
          %s270 = scalar_lea.sflag [#allocation4], %s269
          %s271 = sand.u32 %s47, 1
          %s272 = smul.addr %s271, 8
          %s273 = scalar_lea.vmem [#allocation3], %s272
          %s275 = ssub.s32 128, 128
          %276 = vsyncadd %s270, %s275
          %s277 = smul.addr %s32, 128
          %s278 = scalar_lea.hbm %s0, %s277
          %s280 = sshll.u32 %s273, 4
          %s281 = int_to_ptr.vmem [resolvable:$true] %s280
          %283 = dma.hbm_to_vmem [thread:$0]  %s278, 128, %s281, %s270
        $region20: #{_encoder_pallas.1} parent=15 // pred_fallthru
          _
        // Predicated region
        $region21: #{_encoder_pallas.1} parent=15 // pred_check
          %p284 = pneg %p83
        $region22: #{_encoder_pallas.1} parent=15 // pred_check_branch
          %286 = sbr.rel (%p284) target = $region24
        $region23: #{_encoder_pallas.1} parent=15 // pred_region
          %s287 = sand.u32 %s25, 1
          %s288 = scalar_lea.sflag [#allocation7], %s287
          %s289 = sand.u32 %s73, 1
          %s290 = smul.addr %s289, 32
          %s291 = scalar_lea.vmem [#allocation6], %s290
          %s293 = ssub.s32 512, 512
          %294 = vsyncadd %s288, %s293
          %s295 = smul.addr %s32, 4
          %s296 = smul.addr %s295, 128
          %s297 = scalar_lea.hbm %s1, %s296
          %s298 = sshll.u32 %s291, 4
          %s299 = int_to_ptr.vmem [resolvable:$true] %s298
          %304 = dma.hbm_to_vmem [thread:$0]  %s297, 512, %s299, %s288, 128, 128, 8
        $region24: #{_encoder_pallas.1} parent=15 // pred_fallthru
          _
        // Predicated region
        $region25: #{_encoder_pallas.1} parent=15 // pred_check
          %p305 = pneg %p109
        $region26: #{_encoder_pallas.1} parent=15 // pred_check_branch
          %307 = sbr.rel (%p305) target = $region28
        $region27: #{_encoder_pallas.1} parent=15 // pred_region
          %p308 = scmp.lt.s32.totalorder %s33, 1
          %s309 = scalar_select %p308, %s33, 1
          %s310 = smul.addr %s309, 16
          %s311 = smul.addr %s310, 8
          %s312 = scalar_lea.vmem %s2, %s311
        $region28: #{_encoder_pallas.1} parent=15 // pred_fallthru
          _
        // Predicated region
        $region29: #{_encoder_pallas.1} parent=15 // pred_check
          %p313 = pneg %p135
        $region30: #{_encoder_pallas.1} parent=15 // pred_check_branch
          %315 = sbr.rel (%p313) target = $region32
        $region31: #{_encoder_pallas.1} parent=15 // pred_region
          %p316 = scmp.lt.s32.totalorder %s33, 1
          %s317 = scalar_select %p316, %s33, 1
          %s318 = smul.addr %s317, 8
          %s319 = smul.addr %s318, 8
          %s320 = scalar_lea.vmem %s3, %s319
        $region32: #{_encoder_pallas.1} parent=15 // pred_fallthru
          _
        // Predicated region
        $region33: #{_encoder_pallas.1} parent=15 // pred_check
          %p321 = pneg %p161
        $region34: #{_encoder_pallas.1} parent=15 // pred_check_branch
          %323 = sbr.rel (%p321) target = $region36
        $region35: #{_encoder_pallas.1} parent=15 // pred_region
          %s324 = sand.u32 %s25, 1
          %s325 = scalar_lea.sflag [#allocation7], %s324
          %s326 = sand.u32 %s151, 1
          %s327 = smul.addr %s326, 64
          %s328 = scalar_lea.vmem [#allocation8], %s327
          %s330 = ssub.s32 1024, 1024
          %331 = vsyncadd %s325, %s330
          %s332 = smul.addr %s33, 8
          %s333 = smul.addr %s332, 128
          %s334 = scalar_lea.hbm %s4, %s333
          %s335 = sshll.u32 %s328, 4
          %s336 = int_to_ptr.vmem [resolvable:$true] %s335
          %341 = dma.hbm_to_vmem [thread:$0]  %s334, 1024, %s336, %s325, 128, 128, 8
        $region36: #{_encoder_pallas.1} parent=15 // pred_fallthru
          _
        // Predicated region
        $region37: #{_encoder_pallas.1} parent=15 // pred_check
          %p342 = pneg %p187
        $region38: #{_encoder_pallas.1} parent=15 // pred_check_branch
          %344 = sbr.rel (%p342) target = $region40
        $region39: #{_encoder_pallas.1} parent=15 // pred_region
          %p345 = scmp.lt.s32.totalorder %s33, 1
          %s346 = scalar_select %p345, %s33, 1
          %s347 = smul.addr %s346, 16
          %s348 = smul.addr %s347, 8
          %s349 = scalar_lea.vmem %s5, %s348
        $region40: #{_encoder_pallas.1} parent=15 // pred_fallthru
          _
        // Predicated region
        $region41: #{_encoder_pallas.1} parent=15 // pred_check
          %p350 = pneg %p213
        $region42: #{_encoder_pallas.1} parent=15 // pred_check_branch
          %352 = sbr.rel (%p350) target = $region44
        $region43: #{_encoder_pallas.1} parent=15 // pred_region
          %s353 = sand.u32 %s203, 1
          %s354 = scalar_lea.sflag [#allocation10], %s353
          %s355 = sand.u32 %s203, 1
          %s356 = smul.addr %s355, 16
          %s357 = scalar_lea.vmem [#allocation9], %s356
          %s359 = ssub.s32 256, 256
          %360 = vsyncadd %s354, %s359
          %s361 = smul.addr %s33, 2
          %s362 = smul.addr %s361, 128
          %s363 = scalar_lea.hbm %s6, %s362
          %s365 = sshll.u32 %s357, 4
          %s366 = int_to_ptr.vmem [resolvable:$true] %s365
          %368 = dma.hbm_to_vmem [thread:$0]  %s363, 256, %s366, %s354
        $region44: #{_encoder_pallas.1} parent=15 // pred_fallthru
          _
      $region16: #{_encoder_pallas.1} parent=5 // pred_fallthru
        _
      %p369 = scmp.le.s32.totalorder 1, %s25
      %p370 = scmp.lt.s32.totalorder %s25, 5
      %p371 = pnand %p369, %p370
      %p372 = pneg %p371
      // Predicated region
      $region45: #{_encoder_pallas.1} parent=5 // pred_check
        _
      $region46: #{_encoder_pallas.1} parent=5 // pred_check_branch
        %374 = sbr.rel (%p371) target = $region48
      $region47: #{_encoder_pallas.1} parent=5 // pred_region
        %s375 = ssub.s32 %s25, 1
        %s376 = sand.u32 %s50, 1
        %s377 = scalar_lea.sflag [#allocation4], %s376
        %s378 = sand.u32 %s50, 1
        %s379 = smul.addr %s378, 8
        %s380 = scalar_lea.vmem [#allocation3], %s379
        // Predicated region
        $region49: #{_encoder_pallas.1} parent=47 // pred_check
          %p381 = pneg %p63
        $region50: #{_encoder_pallas.1} parent=47 // pred_check_branch
          %383 = sbr.rel (%p381) target = $region52
        $region51: #{_encoder_pallas.1} parent=47 // pred_region
          %384 = dma.done %s377, 128
        $region52: #{_encoder_pallas.1} parent=47 // pred_fallthru
          _
        %s385 = sand.u32 %s30, 1
        %s386 = scalar_lea.sflag [#allocation7], %s385
        %s387 = sand.u32 %s76, 1
        %s388 = smul.addr %s387, 32
        %s389 = scalar_lea.vmem [#allocation6], %s388
        // Predicated region
        $region53: #{_encoder_pallas.1} parent=47 // pred_check
          %p390 = pneg %p89
        $region54: #{_encoder_pallas.1} parent=47 // pred_check_branch
          %392 = sbr.rel (%p390) target = $region56
        $region55: #{_encoder_pallas.1} parent=47 // pred_region
          %393 = dma.done %s386, 512
        $region56: #{_encoder_pallas.1} parent=47 // pred_fallthru
          _
        %s394 = sand.u32 %s30, 1
        %s395 = scalar_lea.sflag [#allocation7], %s394
        %s396 = sand.u32 %s154, 1
        %s397 = smul.addr %s396, 64
        %s398 = scalar_lea.vmem [#allocation8], %s397
        // Predicated region
        $region57: #{_encoder_pallas.1} parent=47 // pred_check
          %p399 = pneg %p167
        $region58: #{_encoder_pallas.1} parent=47 // pred_check_branch
          %401 = sbr.rel (%p399) target = $region60
        $region59: #{_encoder_pallas.1} parent=47 // pred_region
          %402 = dma.done %s395, 1024
        $region60: #{_encoder_pallas.1} parent=47 // pred_fallthru
          _
        %s403 = sand.u32 %s206, 1
        %s404 = scalar_lea.sflag [#allocation10], %s403
        %s405 = sand.u32 %s206, 1
        %s406 = smul.addr %s405, 16
        %s407 = scalar_lea.vmem [#allocation9], %s406
        // Predicated region
        $region61: #{_encoder_pallas.1} parent=47 // pred_check
          %p408 = pneg %p219
        $region62: #{_encoder_pallas.1} parent=47 // pred_check_branch
          %410 = sbr.rel (%p408) target = $region64
        $region63: #{_encoder_pallas.1} parent=47 // pred_region
          %411 = dma.done %s404, 256
        $region64: #{_encoder_pallas.1} parent=47 // pred_fallthru
          _
        %s412 = sand.u32 %s50, 1
        %s413 = scalar_lea.sflag [#allocation4], %s412
        %s414 = sand.u32 %s50, 1
        %s415 = smul.addr %s414, 8
        %s416 = scalar_lea.vmem [#allocation3], %s415
        %p417 = pneg %p63
        %p418 = pneg %p60
        %s419 = sand.u32 %s30, 1
        %s420 = scalar_lea.sflag [#allocation7], %s419
        %s421 = sand.u32 %s76, 1
        %s422 = smul.addr %s421, 32
        %s423 = scalar_lea.vmem [#allocation6], %s422
        %p424 = pneg %p89
        %p425 = pneg %p86
        %p426 = scmp.lt.s32.totalorder %s35, 1
        %s427 = scalar_select %p426, %s35, 1
        %s428 = smul.addr %s427, 16
        %s429 = smul.addr %s428, 8
        %s430 = scalar_lea.vmem %s2, %s429
        %p431 = pneg %p115
        %p432 = pneg %p112
        %p433 = scmp.lt.s32.totalorder %s35, 1
        %s434 = scalar_select %p433, %s35, 1
        %s435 = smul.addr %s434, 8
        %s436 = smul.addr %s435, 8
        %s437 = scalar_lea.vmem %s3, %s436
        %p438 = pneg %p141
        %p439 = pneg %p138
        %s440 = sand.u32 %s30, 1
        %s441 = scalar_lea.sflag [#allocation7], %s440
        %s442 = sand.u32 %s154, 1
        %s443 = smul.addr %s442, 64
        %s444 = scalar_lea.vmem [#allocation8], %s443
        %p445 = pneg %p167
        %p446 = pneg %p164
        %p447 = scmp.lt.s32.totalorder %s35, 1
        %s448 = scalar_select %p447, %s35, 1
        %s449 = smul.addr %s448, 16
        %s450 = smul.addr %s449, 8
        %s451 = scalar_lea.vmem %s5, %s450
        %p452 = pneg %p193
        %p453 = pneg %p190
        %s454 = sand.u32 %s206, 1
        %s455 = scalar_lea.sflag [#allocation10], %s454
        %s456 = sand.u32 %s206, 1
        %s457 = smul.addr %s456, 16
        %s458 = scalar_lea.vmem [#allocation9], %s457
        %p459 = pneg %p219
        %p460 = pneg %p216
        %p461 = pneg %p247
        %p462 = pneg %p244
        %s463 = sand.u32 %s234, 1
        %s464 = scalar_lea.sflag [#allocation5], %s463
        %s465 = sand.u32 %s234, 1
        %s466 = smul.addr %s465, 8
        %s467 = scalar_lea.vmem [#allocation11], %s466
        %p468 = scmp.lt.s32.totalorder %s35, 1
        %s469 = scalar_select %p468, %s35, 1
        %s470 = smul.addr %s469, 16
        %s471 = smul.addr %s470, 8
        %s472 = scalar_lea.vmem %s2, %s471
        %p473 = scmp.lt.s32.totalorder %s35, 1
        %s474 = scalar_select %p473, %s35, 1
        %s475 = smul.addr %s474, 8
        %s476 = smul.addr %s475, 8
        %s477 = scalar_lea.vmem %s3, %s476
        %p478 = scmp.lt.s32.totalorder %s35, 1
        %s479 = scalar_select %p478, %s35, 1
        %s480 = smul.addr %s479, 16
        %s481 = smul.addr %s480, 8
        %s482 = scalar_lea.vmem %s5, %s481
        %p483 = scmp.eq.s32.totalorder %s35, 0
        // Predicated region
        $region65: #{_encoder_pallas.1} parent=47 // pred_check
          %p484 = pneg %p483
        $region66: #{_encoder_pallas.1} parent=47 // pred_check_branch
          %486 = sbr.rel (%p484) target = $region68
        $region67: #{_encoder_pallas.1} parent=47 // pred_region
          %v487 = vld [vmem:[%s380] sm:$0xff]
          %vm488 = vcmask 523264
          %489 = vst.msk [vmem:[#allocation2] sm:$0xff] %vm488, %v487
        $region68: #{_encoder_pallas.1} parent=47 // pred_fallthru
          _
        %v490 = vld [vmem:[#allocation2] sm:$0xff]
        %v491 = vld [vmem:[%s389] sm:$0xff]
        %v492 = vld [vmem:[%s389 + $0x8] sm:$0xff]
        %v493 = vld [vmem:[%s389 + $0x10] sm:$0xff]
        %v494 = vld [vmem:[%s389 + $0x18] sm:$0xff]
        %v495 = vld [vmem:[%s472] sm:$0xff]
        %v496 = vld [vmem:[%s472 + $0x8] sm:$0xff]
        %v497 = vld [vmem:[%s472 + $0x10] sm:$0xff]
        %v498 = vld [vmem:[%s472 + $0x18] sm:$0xff]
        %v499 = vld [vmem:[%s472 + $0x20] sm:$0xff]
        %v500 = vld [vmem:[%s472 + $0x28] sm:$0xff]
        %v501 = vld [vmem:[%s472 + $0x30] sm:$0xff]
        %v502 = vld [vmem:[%s472 + $0x38] sm:$0xff]
        %v503 = vld [vmem:[%s472 + $0x40] sm:$0xff]
        %v504 = vld [vmem:[%s472 + $0x48] sm:$0xff]
        %v505 = vld [vmem:[%s472 + $0x50] sm:$0xff]
        %v506 = vld [vmem:[%s472 + $0x58] sm:$0xff]
        %v507 = vld [vmem:[%s472 + $0x60] sm:$0xff]
        %v508 = vld [vmem:[%s472 + $0x68] sm:$0xff]
        %v509 = vld [vmem:[%s472 + $0x70] sm:$0xff]
        %v510 = vld [vmem:[%s472 + $0x78] sm:$0xff]
        %v511 = vld [vmem:[%s477] sm:$0xff]
        %v512 = vld [vmem:[%s477 + $0x8] sm:$0xff]
        %v513 = vld [vmem:[%s477 + $0x10] sm:$0xff]
        %v514 = vld [vmem:[%s477 + $0x18] sm:$0xff]
        %v515 = vld [vmem:[%s477 + $0x20] sm:$0xff]
        %v516 = vld [vmem:[%s477 + $0x28] sm:$0xff]
        %v517 = vld [vmem:[%s477 + $0x30] sm:$0xff]
        %v518 = vld [vmem:[%s477 + $0x38] sm:$0xff]
        %v519 = vld [vmem:[%s398] sm:$0xff]
        %v520 = vld [vmem:[%s398 + $0x8] sm:$0xff]
        %v521 = vld [vmem:[%s398 + $0x10] sm:$0xff]
        %v522 = vld [vmem:[%s398 + $0x18] sm:$0xff]
        %v523 = vld [vmem:[%s398 + $0x20] sm:$0xff]
        %v524 = vld [vmem:[%s398 + $0x28] sm:$0xff]
        %v525 = vld [vmem:[%s398 + $0x30] sm:$0xff]
        %v526 = vld [vmem:[%s398 + $0x38] sm:$0xff]
        %v527 = vld [vmem:[%s482] sm:$0xff]
        %v528 = vld [vmem:[%s482 + $0x8] sm:$0xff]
        %v529 = vld [vmem:[%s482 + $0x10] sm:$0xff]
        %v530 = vld [vmem:[%s482 + $0x18] sm:$0xff]
        %v531 = vld [vmem:[%s482 + $0x20] sm:$0xff]
        %v532 = vld [vmem:[%s482 + $0x28] sm:$0xff]
        %v533 = vld [vmem:[%s482 + $0x30] sm:$0xff]
        %v534 = vld [vmem:[%s482 + $0x38] sm:$0xff]
        %v535 = vld [vmem:[%s482 + $0x40] sm:$0xff]
        %v536 = vld [vmem:[%s482 + $0x48] sm:$0xff]
        %v537 = vld [vmem:[%s482 + $0x50] sm:$0xff]
        %v538 = vld [vmem:[%s482 + $0x58] sm:$0xff]
        %v539 = vld [vmem:[%s482 + $0x60] sm:$0xff]
        %v540 = vld [vmem:[%s482 + $0x68] sm:$0xff]
        %v541 = vld [vmem:[%s482 + $0x70] sm:$0xff]
        %v542 = vld [vmem:[%s482 + $0x78] sm:$0xff]
        %v543 = vld [vmem:[%s407] sm:$0xff]
        %v544 = vld [vmem:[%s407 + $0x8] sm:$0xff]
        %v545 = vlaneseq
        %v546 = vshrl.u32 %v545, 7
        %v547 = vsub.s32 0, %v546
        %v548 = vrot.slane %v543, %v547
        %v549 = vlaneseq
        %v550 = vshrl.u32 %v549, 7
        %v551 = vsub.s32 0, %v550
        %v552 = vrot.slane %v544, %v551
        %vm553 = vcmask 523264
        %v555 = vsel %vm553, %v490, 0
        %557 = vmatprep.subr.mxu0 %v496
        %558 = vmatpush1.msra.mxu0 %v495
        %559 = vmatprep.subr.mxu0 %v498
        %560 = vmatpush1.msra.mxu0 %v497
        %561 = vmatprep.subr.mxu0 %v500
        %562 = vmatpush1.msra.mxu0 %v499
        %563 = vmatprep.subr.mxu0 %v502
        %564 = vmatpush1.msra.mxu0 %v501
        %565 = vmatprep.subr.mxu0 %v504
        %566 = vmatpush1.msra.mxu0 %v503
        %567 = vmatprep.subr.mxu0 %v506
        %568 = vmatpush1.msra.mxu0 %v505
        %569 = vmatprep.subr.mxu0 %v508
        %570 = vmatpush1.msra.mxu0 %v507
        %571 = vmatprep.subr.mxu0 %v510
        %572 = vmatpush1.msra.mxu0 %v509
        %573 = vmatprep.subr.mxu0 0.0
        %574 = vmatpush1.msra.mxu0 0.0
        %575 = vmatprep.subr.mxu0 0.0
        %576 = vmatpush1.msra.mxu0 0.0
        %577 = vmatprep.subr.mxu0 0.0
        %578 = vmatpush1.msra.mxu0 0.0
        %579 = vmatprep.subr.mxu0 0.0
        %580 = vmatpush1.msra.mxu0 0.0
        %581 = vmatprep.subr.mxu0 0.0
        %582 = vmatpush1.msra.mxu0 0.0
        %583 = vmatprep.subr.mxu0 0.0
        %584 = vmatpush1.msra.mxu0 0.0
        %585 = vmatprep.subr.mxu0 0.0
        %586 = vmatpush1.msra.mxu0 0.0
        %587 = vmatprep.subr.mxu0 0.0
        %588 = vmatpush1.msra.mxu0 0.0
        %589 = vmatprep.subr.mxu0 0.0
        %590 = vmatpush1.msra.mxu0 0.0
        %591 = vmatprep.subr.mxu0 0.0
        %592 = vmatpush1.msra.mxu0 0.0
        %593 = vmatprep.subr.mxu0 0.0
        %594 = vmatpush1.msra.mxu0 0.0
        %595 = vmatprep.subr.mxu0 0.0
        %596 = vmatpush1.msra.mxu0 0.0
        %597 = vmatprep.subr.mxu0 0.0
        %598 = vmatpush1.msra.mxu0 0.0
        %599 = vmatprep.subr.mxu0 0.0
        %600 = vmatpush1.msra.mxu0 0.0
        %601 = vmatprep.subr.mxu0 0.0
        %602 = vmatpush1.msra.mxu0 0.0
        %603 = vmatprep.subr.mxu0 0.0
        %604 = vmatpush1.msra.mxu0 0.0
        %605 = vmatprep.subr.mxu0 0.0
        %606 = vmatpush1.msra.mxu0 0.0
        %607 = vmatprep.subr.mxu0 0.0
        %608 = vmatpush1.msra.mxu0 0.0
        %609 = vmatprep.subr.mxu0 0.0
        %610 = vmatpush1.msra.mxu0 0.0
        %611 = vmatprep.subr.mxu0 0.0
        %612 = vmatpush1.msra.mxu0 0.0
        %613 = vmatprep.subr.mxu0 0.0
        %614 = vmatpush1.msra.mxu0 0.0
        %615 = vmatprep.subr.mxu0 0.0
        %616 = vmatpush1.msra.mxu0 0.0
        %617 = vmatprep.subr.mxu0 0.0
        %618 = vmatpush1.msra.mxu0 0.0
        %619 = vmatprep.subr.mxu0 0.0
        %620 = vmatpush1.msra.mxu0 0.0
        %621 = vmatprep.mubr.f32.mxu0 0.0
        %622 = vmatmul.mubr.f32.gmra.mrb[0].mxu0 %v555
        %v623 = vpop.f32.mrb[0].mxu0
        %v624 = vadd.f32 %v548, %v623
        %v625 = vpop.f32.mrb[0].mxu0
        %v626 = vadd.f32 %v552, %v625
        %627 = vdwg.mxu0
        %629 = vrot.lane.b32.xlu0 %v624, 112
        %v630 = vpop.permute.xlu0 %629
        %631 = vrot.lane.b32.xlu0 %v624, 96
        %v632 = vpop.permute.xlu0 %631
        %633 = vrot.lane.b32.xlu0 %v624, 80
        %v634 = vpop.permute.xlu0 %633
        %636 = vrot.lane.b32.xlu0 %v626, 112
        %v637 = vpop.permute.xlu0 %636
        %639 = vrot.lane.b32.xlu0 %v626, 96
        %v640 = vpop.permute.xlu0 %639
        %642 = vrot.lane.b32.xlu0 %v626, 80
        %v643 = vpop.permute.xlu0 %642
        %645 = vrot.lane.b32.xlu0 %v624, 64
        %v646 = vpop.permute.xlu0 %645
        %647 = vrot.lane.b32.xlu0 %v630, 64
        %v648 = vpop.permute.xlu0 %647
        %649 = vrot.lane.b32.xlu0 %v632, 64
        %v650 = vpop.permute.xlu0 %649
        %651 = vrot.lane.b32.xlu0 %v634, 64
        %v652 = vpop.permute.xlu0 %651
        %vm653 = vcmask 130048
        %v654 = vsel %vm653, %v624, 0
        %v656 = vsel %vm653, %v630, 0
        %v658 = vsel %vm653, %v632, 0
        %v660 = vsel %vm653, %v634, 0
        %v662 = vsel %vm653, %v646, 0
        %v664 = vsel %vm653, %v648, 0
        %v666 = vsel %vm653, %v650, 0
        %v668 = vsel %vm653, %v652, 0
        %670 = vmatprep.subr.mxu0 0.0
        %671 = vmatpush1.xpose.msra.mxu0 %v662
        %672 = vmatprep.subr.mxu0 0.0
        %673 = vmatpush1.xpose.msra.mxu0 %v664
        %674 = vmatprep.subr.mxu0 0.0
        %675 = vmatpush1.xpose.msra.mxu0 %v666
        %676 = vmatprep.subr.mxu0 0.0
        %677 = vmatpush1.xpose.msra.mxu0 %v668
        %678 = vmatprep.subr.mxu0 0.0
        %679 = vmatpush1.xpose.msra.mxu0 0.0
        %680 = vmatprep.subr.mxu0 0.0
        %681 = vmatpush1.xpose.msra.mxu0 0.0
        %682 = vmatprep.subr.mxu0 0.0
        %683 = vmatpush1.xpose.msra.mxu0 0.0
        %684 = vmatprep.subr.mxu0 0.0
        %685 = vmatpush1.xpose.msra.mxu0 0.0
        %686 = vmatprep.subr.mxu0 0.0
        %687 = vmatpush1.xpose.msra.mxu0 0.0
        %688 = vmatprep.subr.mxu0 0.0
        %689 = vmatpush1.xpose.msra.mxu0 0.0
        %690 = vmatprep.subr.mxu0 0.0
        %691 = vmatpush1.xpose.msra.mxu0 0.0
        %692 = vmatprep.subr.mxu0 0.0
        %693 = vmatpush1.xpose.msra.mxu0 0.0
        %694 = vmatprep.subr.mxu0 0.0
        %695 = vmatpush1.xpose.msra.mxu0 0.0
        %696 = vmatprep.subr.mxu0 0.0
        %697 = vmatpush1.xpose.msra.mxu0 0.0
        %698 = vmatprep.subr.mxu0 0.0
        %699 = vmatpush1.xpose.msra.mxu0 0.0
        %700 = vmatprep.subr.mxu0 0.0
        %701 = vmatpush1.xpose.msra.mxu0 0.0
        %702 = vmatprep.subr.mxu0 0.0
        %703 = vmatpush1.xpose.msra.mxu0 0.0
        %704 = vmatprep.subr.mxu0 0.0
        %705 = vmatpush1.xpose.msra.mxu0 0.0
        %706 = vmatprep.subr.mxu0 0.0
        %707 = vmatpush1.xpose.msra.mxu0 0.0
        %708 = vmatprep.subr.mxu0 0.0
        %709 = vmatpush1.xpose.msra.mxu0 0.0
        %710 = vmatprep.subr.mxu0 0.0
        %711 = vmatpush1.xpose.msra.mxu0 0.0
        %712 = vmatprep.subr.mxu0 0.0
        %713 = vmatpush1.xpose.msra.mxu0 0.0
        %714 = vmatprep.subr.mxu0 0.0
        %715 = vmatpush1.xpose.msra.mxu0 0.0
        %716 = vmatprep.subr.mxu0 0.0
        %717 = vmatpush1.xpose.msra.mxu0 0.0
        %718 = vmatprep.subr.mxu0 0.0
        %719 = vmatpush1.xpose.msra.mxu0 0.0
        %720 = vmatprep.subr.mxu0 0.0
        %721 = vmatpush1.xpose.msra.mxu0 0.0
        %722 = vmatprep.subr.mxu0 0.0
        %723 = vmatpush1.xpose.msra.mxu0 0.0
        %724 = vmatprep.subr.mxu0 0.0
        %725 = vmatpush1.xpose.msra.mxu0 0.0
        %726 = vmatprep.subr.mxu0 0.0
        %727 = vmatpush1.xpose.msra.mxu0 0.0
        %728 = vmatprep.subr.mxu0 0.0
        %729 = vmatpush1.xpose.msra.mxu0 0.0
        %730 = vmatprep.subr.mxu0 0.0
        %731 = vmatpush1.xpose.msra.mxu0 0.0
        %732 = vmatprep.subr.mxu0 0.0
        %733 = vmatpush1.xpose.msra.mxu0 0.0
        %734 = vmatprep.mubr.f32.mxu0 0.0
        %735 = vmatmul.mubr.f32.gmra.mrb[0].mxu0 %v654
        %v736 = vpop.f32.mrb[0].mxu0
        %v737 = vadd.f32 %v491, %v736
        %v738 = vpop.f32.mrb[0].mxu0
        %739 = vmatprep.mubr.f32.mxu0 0.0
        %740 = vmatmul.mubr.f32.gmra.mrb[0].mxu0 %v656
        %v741 = vpop.f32.mrb[0].mxu0
        %v742 = vadd.f32 %v492, %v741
        %v743 = vpop.f32.mrb[0].mxu0
        %744 = vmatprep.mubr.f32.mxu0 0.0
        %745 = vmatmul.mubr.f32.gmra.mrb[0].mxu0 %v658
        %v746 = vpop.f32.mrb[0].mxu0
        %v747 = vadd.f32 %v493, %v746
        %v748 = vpop.f32.mrb[0].mxu0
        %749 = vmatprep.mubr.f32.mxu0 0.0
        %750 = vmatmul.mubr.f32.gmra.mrb[0].mxu0 %v660
        %v751 = vpop.f32.mrb[0].mxu0
        %v752 = vadd.f32 %v494, %v751
        %v753 = vpop.f32.mrb[0].mxu0
        %754 = vdwg.mxu0
        %vm755 = vcmask 261120
        %v756 = vsel %vm755, %v737, -inf
        %757 = vmax.xlane.f32.xlu0 %v756
        %v758 = vpop.xlane.xlu0 %757
        %v759 = vsel %vm755, %v742, -inf
        %760 = vmax.xlane.f32.xlu0 %v759
        %v761 = vpop.xlane.xlu0 %760
        %v762 = vsel %vm755, %v747, -inf
        %763 = vmax.xlane.f32.xlu0 %v762
        %v764 = vpop.xlane.xlu0 %763
        %v765 = vsel %vm755, %v752, -inf
        %766 = vmax.xlane.f32.xlu0 %v765
        %v767 = vpop.xlane.xlu0 %766
        %v768 = vsub.f32 %v737, %v758
        %v769 = vsub.f32 %v742, %v761
        %v770 = vsub.f32 %v747, %v764
        %v771 = vsub.f32 %v752, %v767
        %v772 = vmul.f32 %v768, 1.442695
        %v773 = vpow.pop %v772
        %v774 = vmul.f32 %v769, 1.442695
        %v775 = vpow.pop %v774
        %v776 = vmul.f32 %v770, 1.442695
        %v777 = vpow.pop %v776
        %v778 = vmul.f32 %v771, 1.442695
        %v779 = vpow.pop %v778
        %v780 = vsel %vm755, %v773, 0.0
        %781 = vadd.xlane.f32.xlu0 %v780
        %v782 = vpop.xlane.xlu0 %781
        %v783 = vsel %vm755, %v775, 0.0
        %784 = vadd.xlane.f32.xlu0 %v783
        %v785 = vpop.xlane.xlu0 %784
        %v786 = vsel %vm755, %v777, 0.0
        %787 = vadd.xlane.f32.xlu0 %v786
        %v788 = vpop.xlane.xlu0 %787
        %v789 = vsel %vm755, %v779, 0.0
        %790 = vadd.xlane.f32.xlu0 %v789
        %v791 = vpop.xlane.xlu0 %790
        %v792 = vrcp.pop %v782
        %v793 = vrcp.pop %v785
        %v794 = vrcp.pop %v788
        %v795 = vrcp.pop %v791
        %v796 = vmul.f32 %v773, %v792
        %v797 = vmul.f32 %v775, %v793
        %v798 = vmul.f32 %v777, %v794
        %v799 = vmul.f32 %v779, %v795
        %v801 = vsel %vm755, %v796, 0
        %v804 = vsel %vm755, %v797, 0
        %v807 = vsel %vm755, %v798, 0
        %v810 = vsel %vm755, %v799, 0
        %812 = vmatprep.subr.mxu0 0.0
        %813 = vmatpush1.msra.mxu0 %v626
        %814 = vmatprep.subr.mxu0 0.0
        %815 = vmatpush1.msra.mxu0 %v637
        %816 = vmatprep.subr.mxu0 0.0
        %817 = vmatpush1.msra.mxu0 %v640
        %818 = vmatprep.subr.mxu0 0.0
        %819 = vmatpush1.msra.mxu0 %v643
        %820 = vmatprep.subr.mxu0 0.0
        %821 = vmatpush1.msra.mxu0 0.0
        %822 = vmatprep.subr.mxu0 0.0
        %823 = vmatpush1.msra.mxu0 0.0
        %824 = vmatprep.subr.mxu0 0.0
        %825 = vmatpush1.msra.mxu0 0.0
        %826 = vmatprep.subr.mxu0 0.0
        %827 = vmatpush1.msra.mxu0 0.0
        %828 = vmatprep.subr.mxu0 0.0
        %829 = vmatpush1.msra.mxu0 0.0
        %830 = vmatprep.subr.mxu0 0.0
        %831 = vmatpush1.msra.mxu0 0.0
        %832 = vmatprep.subr.mxu0 0.0
        %833 = vmatpush1.msra.mxu0 0.0
        %834 = vmatprep.subr.mxu0 0.0
        %835 = vmatpush1.msra.mxu0 0.0
        %836 = vmatprep.subr.mxu0 0.0
        %837 = vmatpush1.msra.mxu0 0.0
        %838 = vmatprep.subr.mxu0 0.0
        %839 = vmatpush1.msra.mxu0 0.0
        %840 = vmatprep.subr.mxu0 0.0
        %841 = vmatpush1.msra.mxu0 0.0
        %842 = vmatprep.subr.mxu0 0.0
        %843 = vmatpush1.msra.mxu0 0.0
        %844 = vmatprep.subr.mxu0 0.0
        %845 = vmatpush1.msra.mxu0 0.0
        %846 = vmatprep.subr.mxu0 0.0
        %847 = vmatpush1.msra.mxu0 0.0
        %848 = vmatprep.subr.mxu0 0.0
        %849 = vmatpush1.msra.mxu0 0.0
        %850 = vmatprep.subr.mxu0 0.0
        %851 = vmatpush1.msra.mxu0 0.0
        %852 = vmatprep.subr.mxu0 0.0
        %853 = vmatpush1.msra.mxu0 0.0
        %854 = vmatprep.subr.mxu0 0.0
        %855 = vmatpush1.msra.mxu0 0.0
        %856 = vmatprep.subr.mxu0 0.0
        %857 = vmatpush1.msra.mxu0 0.0
        %858 = vmatprep.subr.mxu0 0.0
        %859 = vmatpush1.msra.mxu0 0.0
        %860 = vmatprep.subr.mxu0 0.0
        %861 = vmatpush1.msra.mxu0 0.0
        %862 = vmatprep.subr.mxu0 0.0
        %863 = vmatpush1.msra.mxu0 0.0
        %864 = vmatprep.subr.mxu0 0.0
        %865 = vmatpush1.msra.mxu0 0.0
        %866 = vmatprep.subr.mxu0 0.0
        %867 = vmatpush1.msra.mxu0 0.0
        %868 = vmatprep.subr.mxu0 0.0
        %869 = vmatpush1.msra.mxu0 0.0
        %870 = vmatprep.subr.mxu0 0.0
        %871 = vmatpush1.msra.mxu0 0.0
        %872 = vmatprep.subr.mxu0 0.0
        %873 = vmatpush1.msra.mxu0 0.0
        %874 = vmatprep.subr.mxu0 0.0
        %875 = vmatpush1.msra.mxu0 0.0
        %876 = vmatprep.mubr.f32.mxu0 0.0
        %877 = vmatmul.mubr.f32.gmra.mrb[0].mxu0 %v801
        %v878 = vpop.f32.mrb[0].mxu0
        %v879 = vadd.f32 0.0, %v878
        %v880 = vpop.f32.mrb[0].mxu0
        %881 = vmatprep.mubr.f32.mxu0 0.0
        %882 = vmatmul.mubr.f32.gmra.mrb[0].mxu0 %v804
        %v883 = vpop.f32.mrb[0].mxu0
        %v884 = vadd.f32 0.0, %v883
        %v885 = vpop.f32.mrb[0].mxu0
        %886 = vmatprep.mubr.f32.mxu0 0.0
        %887 = vmatmul.mubr.f32.gmra.mrb[0].mxu0 %v807
        %v888 = vpop.f32.mrb[0].mxu0
        %v889 = vadd.f32 0.0, %v888
        %v890 = vpop.f32.mrb[0].mxu0
        %891 = vmatprep.mubr.f32.mxu0 0.0
        %892 = vmatmul.mubr.f32.gmra.mrb[0].mxu0 %v810
        %v893 = vpop.f32.mrb[0].mxu0
        %v894 = vadd.f32 0.0, %v893
        %v895 = vpop.f32.mrb[0].mxu0
        %896 = vdwg.mxu0
        %898 = vrot.lane.b32.xlu0 %v884, 16
        %v899 = vpop.permute.xlu0 %898
        %902 = vrot.lane.b32.xlu0 %v889, 32
        %v903 = vpop.permute.xlu0 %902
        %906 = vrot.lane.b32.xlu0 %v894, 48
        %v907 = vpop.permute.xlu0 %906
        %v909 = vsel %vm653, %v879, %v899
        %v910 = vsel %vm755, %v909, %v903
        %vm911 = vcmask 392192
        %v912 = vsel %vm911, %v910, %v907
        %v913 = vlaneseq
        %v914 = vshrl.u32 %v913, 7
        %v915 = vsub.s32 1, %v914
        %v916 = vrot.slane %v543, %v915
        %v918 = vsel %vm553, %v912, 0
        %920 = vmatprep.subr.mxu0 0.0
        %921 = vmatpush1.msra.mxu0 %v511
        %922 = vmatprep.subr.mxu0 0.0
        %923 = vmatpush1.msra.mxu0 %v512
        %924 = vmatprep.subr.mxu0 0.0
        %925 = vmatpush1.msra.mxu0 %v513
        %926 = vmatprep.subr.mxu0 0.0
        %927 = vmatpush1.msra.mxu0 %v514
        %928 = vmatprep.subr.mxu0 0.0
        %929 = vmatpush1.msra.mxu0 %v515
        %930 = vmatprep.subr.mxu0 0.0
        %931 = vmatpush1.msra.mxu0 %v516
        %932 = vmatprep.subr.mxu0 0.0
        %933 = vmatpush1.msra.mxu0 %v517
        %934 = vmatprep.subr.mxu0 0.0
        %935 = vmatpush1.msra.mxu0 %v518
        %936 = vmatprep.subr.mxu0 0.0
        %937 = vmatpush1.msra.mxu0 0.0
        %938 = vmatprep.subr.mxu0 0.0
        %939 = vmatpush1.msra.mxu0 0.0
        %940 = vmatprep.subr.mxu0 0.0
        %941 = vmatpush1.msra.mxu0 0.0
        %942 = vmatprep.subr.mxu0 0.0
        %943 = vmatpush1.msra.mxu0 0.0
        %944 = vmatprep.subr.mxu0 0.0
        %945 = vmatpush1.msra.mxu0 0.0
        %946 = vmatprep.subr.mxu0 0.0
        %947 = vmatpush1.msra.mxu0 0.0
        %948 = vmatprep.subr.mxu0 0.0
        %949 = vmatpush1.msra.mxu0 0.0
        %950 = vmatprep.subr.mxu0 0.0
        %951 = vmatpush1.msra.mxu0 0.0
        %952 = vmatprep.subr.mxu0 0.0
        %953 = vmatpush1.msra.mxu0 0.0
        %954 = vmatprep.subr.mxu0 0.0
        %955 = vmatpush1.msra.mxu0 0.0
        %956 = vmatprep.subr.mxu0 0.0
        %957 = vmatpush1.msra.mxu0 0.0
        %958 = vmatprep.subr.mxu0 0.0
        %959 = vmatpush1.msra.mxu0 0.0
        %960 = vmatprep.subr.mxu0 0.0
        %961 = vmatpush1.msra.mxu0 0.0
        %962 = vmatprep.subr.mxu0 0.0
        %963 = vmatpush1.msra.mxu0 0.0
        %964 = vmatprep.subr.mxu0 0.0
        %965 = vmatpush1.msra.mxu0 0.0
        %966 = vmatprep.subr.mxu0 0.0
        %967 = vmatpush1.msra.mxu0 0.0
        %968 = vmatprep.subr.mxu0 0.0
        %969 = vmatpush1.msra.mxu0 0.0
        %970 = vmatprep.subr.mxu0 0.0
        %971 = vmatpush1.msra.mxu0 0.0
        %972 = vmatprep.subr.mxu0 0.0
        %973 = vmatpush1.msra.mxu0 0.0
        %974 = vmatprep.subr.mxu0 0.0
        %975 = vmatpush1.msra.mxu0 0.0
        %976 = vmatprep.subr.mxu0 0.0
        %977 = vmatpush1.msra.mxu0 0.0
        %978 = vmatprep.subr.mxu0 0.0
        %979 = vmatpush1.msra.mxu0 0.0
        %980 = vmatprep.subr.mxu0 0.0
        %981 = vmatpush1.msra.mxu0 0.0
        %982 = vmatprep.subr.mxu0 0.0
        %983 = vmatpush1.msra.mxu0 0.0
        %984 = vmatprep.mubr.f32.mxu0 0.0
        %985 = vmatmul.mubr.f32.gmra.mrb[0].mxu0 %v918
        %v986 = vpop.f32.mrb[0].mxu0
        %v987 = vadd.f32 %v916, %v986
        %v988 = vpop.f32.mrb[0].mxu0
        %989 = vdwg.mxu0
        %v990 = vadd.f32 %v987, %v490
        %v991 = vsel %vm553, %v990, 0.0
        %992 = vadd.xlane.f32.xlu0 %v991
        %v993 = vpop.xlane.xlu0 %992
        %v994 = vrcp.pop 64.0
        %v995 = vmul.f32 %v993, %v994
        %v996 = vsub.f32 %v990, %v995
        %v997 = vmul.f32 %v996, %v996
        %v998 = vsel %vm553, %v997, 0.0
        %999 = vadd.xlane.f32.xlu0 %v998
        %v1000 = vpop.xlane.xlu0 %999
        %v1001 = vmul.f32 %v1000, %v994
        %v1002 = vadd.f32 %v1001, 1e-12
        %v1003 = vrsqrt.pop %v1002
        %v1004 = vmul.f32 %v996, %v1003
        %v1005 = vlaneseq
        %v1006 = vshrl.u32 %v1005, 7
        %v1007 = vsub.s32 2, %v1006
        %v1008 = vrot.slane %v543, %v1007
        %v1009 = vmul.f32 %v1008, %v1004
        %v1010 = vlaneseq
        %v1011 = vshrl.u32 %v1010, 7
        %v1012 = vsub.s32 3, %v1011
        %v1013 = vrot.slane %v543, %v1012
        %v1014 = vadd.f32 %v1009, %v1013
        %v1015 = vlaneseq
        %v1016 = vshrl.u32 %v1015, 7
        %v1017 = vsub.s32 4, %v1016
        %v1018 = vrot.slane %v543, %v1017
        %v1020 = vsel %vm553, %v1014, 0
        %1022 = vmatprep.subr.mxu0 0.0
        %1023 = vmatpush1.msra.mxu0 %v519
        %1024 = vmatprep.subr.mxu0 0.0
        %1025 = vmatpush1.msra.mxu0 %v520
        %1026 = vmatprep.subr.mxu0 0.0
        %1027 = vmatpush1.msra.mxu0 %v521
        %1028 = vmatprep.subr.mxu0 0.0
        %1029 = vmatpush1.msra.mxu0 %v522
        %1030 = vmatprep.subr.mxu0 0.0
        %1031 = vmatpush1.msra.mxu0 %v523
        %1032 = vmatprep.subr.mxu0 0.0
        %1033 = vmatpush1.msra.mxu0 %v524
        %1034 = vmatprep.subr.mxu0 0.0
        %1035 = vmatpush1.msra.mxu0 %v525
        %1036 = vmatprep.subr.mxu0 0.0
        %1037 = vmatpush1.msra.mxu0 %v526
        %1038 = vmatprep.subr.mxu0 0.0
        %1039 = vmatpush1.msra.mxu0 0.0
        %1040 = vmatprep.subr.mxu0 0.0
        %1041 = vmatpush1.msra.mxu0 0.0
        %1042 = vmatprep.subr.mxu0 0.0
        %1043 = vmatpush1.msra.mxu0 0.0
        %1044 = vmatprep.subr.mxu0 0.0
        %1045 = vmatpush1.msra.mxu0 0.0
        %1046 = vmatprep.subr.mxu0 0.0
        %1047 = vmatpush1.msra.mxu0 0.0
        %1048 = vmatprep.subr.mxu0 0.0
        %1049 = vmatpush1.msra.mxu0 0.0
        %1050 = vmatprep.subr.mxu0 0.0
        %1051 = vmatpush1.msra.mxu0 0.0
        %1052 = vmatprep.subr.mxu0 0.0
        %1053 = vmatpush1.msra.mxu0 0.0
        %1054 = vmatprep.subr.mxu0 0.0
        %1055 = vmatpush1.msra.mxu0 0.0
        %1056 = vmatprep.subr.mxu0 0.0
        %1057 = vmatpush1.msra.mxu0 0.0
        %1058 = vmatprep.subr.mxu0 0.0
        %1059 = vmatpush1.msra.mxu0 0.0
        %1060 = vmatprep.subr.mxu0 0.0
        %1061 = vmatpush1.msra.mxu0 0.0
        %1062 = vmatprep.subr.mxu0 0.0
        %1063 = vmatpush1.msra.mxu0 0.0
        %1064 = vmatprep.subr.mxu0 0.0
        %1065 = vmatpush1.msra.mxu0 0.0
        %1066 = vmatprep.subr.mxu0 0.0
        %1067 = vmatpush1.msra.mxu0 0.0
        %1068 = vmatprep.subr.mxu0 0.0
        %1069 = vmatpush1.msra.mxu0 0.0
        %1070 = vmatprep.subr.mxu0 0.0
        %1071 = vmatpush1.msra.mxu0 0.0
        %1072 = vmatprep.subr.mxu0 0.0
        %1073 = vmatpush1.msra.mxu0 0.0
        %1074 = vmatprep.subr.mxu0 0.0
        %1075 = vmatpush1.msra.mxu0 0.0
        %1076 = vmatprep.subr.mxu0 0.0
        %1077 = vmatpush1.msra.mxu0 0.0
        %1078 = vmatprep.subr.mxu0 0.0
        %1079 = vmatpush1.msra.mxu0 0.0
        %1080 = vmatprep.subr.mxu0 0.0
        %1081 = vmatpush1.msra.mxu0 0.0
        %1082 = vmatprep.subr.mxu0 0.0
        %1083 = vmatpush1.msra.mxu0 0.0
        %1084 = vmatprep.subr.mxu0 0.0
        %1085 = vmatpush1.msra.mxu0 0.0
        %1086 = vmatprep.mubr.f32.mxu0 0.0
        %1087 = vmatmul.mubr.f32.gmra.mrb[0].mxu0 %v1020
        %v1088 = vpop.f32.mrb[0].mxu0
        %v1089 = vadd.f32 %v1018, %v1088
        %v1090 = vpop.f32.mrb[0].mxu0
        %1091 = vdwg.mxu0
        %v1092 = vmul.f32 %v1089, 0.5
        %v1093 = vrcp.pop 1.4142135
        %v1094 = vmul.f32 %v1089, %v1093
        %v1095 = verf.f32.pop %v1094
        %v1096 = vadd.f32 %v1095, 1.0
        %v1097 = vmul.f32 %v1092, %v1096
        %v1098 = vlaneseq
        %v1099 = vshrl.u32 %v1098, 7
        %v1100 = vsub.s32 5, %v1099
        %v1101 = vrot.slane %v543, %v1100
        %1102 = vmatprep.subr.mxu0 0.0
        %1103 = vmatpush1.msra.mxu0 %v527
        %1104 = vmatprep.subr.mxu0 0.0
        %1105 = vmatpush1.msra.mxu0 %v528
        %1106 = vmatprep.subr.mxu0 0.0
        %1107 = vmatpush1.msra.mxu0 %v529
        %1108 = vmatprep.subr.mxu0 0.0
        %1109 = vmatpush1.msra.mxu0 %v530
        %1110 = vmatprep.subr.mxu0 0.0
        %1111 = vmatpush1.msra.mxu0 %v531
        %1112 = vmatprep.subr.mxu0 0.0
        %1113 = vmatpush1.msra.mxu0 %v532
        %1114 = vmatprep.subr.mxu0 0.0
        %1115 = vmatpush1.msra.mxu0 %v533
        %1116 = vmatprep.subr.mxu0 0.0
        %1117 = vmatpush1.msra.mxu0 %v534
        %1118 = vmatprep.subr.mxu0 0.0
        %1119 = vmatpush1.msra.mxu0 %v535
        %1120 = vmatprep.subr.mxu0 0.0
        %1121 = vmatpush1.msra.mxu0 %v536
        %1122 = vmatprep.subr.mxu0 0.0
        %1123 = vmatpush1.msra.mxu0 %v537
        %1124 = vmatprep.subr.mxu0 0.0
        %1125 = vmatpush1.msra.mxu0 %v538
        %1126 = vmatprep.subr.mxu0 0.0
        %1127 = vmatpush1.msra.mxu0 %v539
        %1128 = vmatprep.subr.mxu0 0.0
        %1129 = vmatpush1.msra.mxu0 %v540
        %1130 = vmatprep.subr.mxu0 0.0
        %1131 = vmatpush1.msra.mxu0 %v541
        %1132 = vmatprep.subr.mxu0 0.0
        %1133 = vmatpush1.msra.mxu0 %v542
        %1134 = vmatprep.subr.mxu0 0.0
        %1135 = vmatpush1.msra.mxu0 0.0
        %1136 = vmatprep.subr.mxu0 0.0
        %1137 = vmatpush1.msra.mxu0 0.0
        %1138 = vmatprep.subr.mxu0 0.0
        %1139 = vmatpush1.msra.mxu0 0.0
        %1140 = vmatprep.subr.mxu0 0.0
        %1141 = vmatpush1.msra.mxu0 0.0
        %1142 = vmatprep.subr.mxu0 0.0
        %1143 = vmatpush1.msra.mxu0 0.0
        %1144 = vmatprep.subr.mxu0 0.0
        %1145 = vmatpush1.msra.mxu0 0.0
        %1146 = vmatprep.subr.mxu0 0.0
        %1147 = vmatpush1.msra.mxu0 0.0
        %1148 = vmatprep.subr.mxu0 0.0
        %1149 = vmatpush1.msra.mxu0 0.0
        %1150 = vmatprep.subr.mxu0 0.0
        %1151 = vmatpush1.msra.mxu0 0.0
        %1152 = vmatprep.subr.mxu0 0.0
        %1153 = vmatpush1.msra.mxu0 0.0
        %1154 = vmatprep.subr.mxu0 0.0
        %1155 = vmatpush1.msra.mxu0 0.0
        %1156 = vmatprep.subr.mxu0 0.0
        %1157 = vmatpush1.msra.mxu0 0.0
        %1158 = vmatprep.subr.mxu0 0.0
        %1159 = vmatpush1.msra.mxu0 0.0
        %1160 = vmatprep.subr.mxu0 0.0
        %1161 = vmatpush1.msra.mxu0 0.0
        %1162 = vmatprep.subr.mxu0 0.0
        %1163 = vmatpush1.msra.mxu0 0.0
        %1164 = vmatprep.subr.mxu0 0.0
        %1165 = vmatpush1.msra.mxu0 0.0
        %1166 = vmatprep.mubr.f32.mxu0 0.0
        %1167 = vmatmul.mubr.f32.gmra.mrb[0].mxu0 %v1097
        %v1168 = vpop.f32.mrb[0].mxu0
        %v1169 = vadd.f32 %v1101, %v1168
        %v1170 = vpop.f32.mrb[0].mxu0
        %1171 = vdwg.mxu0
        %v1172 = vadd.f32 %v1169, %v1014
        %v1173 = vsel %vm553, %v1172, 0.0
        %1174 = vadd.xlane.f32.xlu0 %v1173
        %v1175 = vpop.xlane.xlu0 %1174
        %v1176 = vmul.f32 %v1175, %v994
        %v1177 = vsub.f32 %v1172, %v1176
        %v1178 = vmul.f32 %v1177, %v1177
        %v1179 = vsel %vm553, %v1178, 0.0
        %1180 = vadd.xlane.f32.xlu0 %v1179
        %v1181 = vpop.xlane.xlu0 %1180
        %v1182 = vmul.f32 %v1181, %v994
        %v1183 = vadd.f32 %v1182, 1e-12
        %v1184 = vrsqrt.pop %v1183
        %v1185 = vmul.f32 %v1177, %v1184
        %v1186 = vlaneseq
        %v1187 = vshrl.u32 %v1186, 7
        %v1188 = vsub.s32 6, %v1187
        %v1189 = vrot.slane %v543, %v1188
        %v1190 = vmul.f32 %v1189, %v1185
        %v1191 = vlaneseq
        %v1192 = vshrl.u32 %v1191, 7
        %v1193 = vsub.s32 7, %v1192
        %v1194 = vrot.slane %v543, %v1193
        %v1195 = vadd.f32 %v1190, %v1194
        %1196 = vst.msk [vmem:[#allocation2] sm:$0xff] %vm553, %v1195
        %1197 = vst.msk [vmem:[%s467] sm:$0xff] %vm553, %v1195
        %s1198 = sand.u32 %s234, 1
        %s1199 = scalar_lea.sflag [#allocation5], %s1198
        %s1200 = sand.u32 %s234, 1
        %s1201 = smul.addr %s1200, 8
        %s1202 = scalar_lea.vmem [#allocation11], %s1201
        // Predicated region
        $region69: #{_encoder_pallas.1} parent=47 // pred_check
          %p1203 = pneg %p244
        $region70: #{_encoder_pallas.1} parent=47 // pred_check_branch
          %1205 = sbr.rel (%p1203) target = $region72
        $region71: #{_encoder_pallas.1} parent=47 // pred_region
          %s1207 = ssub.s32 128, 128
          %1208 = vsyncadd %s1199, %s1207
          %s1209 = smul.addr %s35, 2
          %s1210 = sadd.s32 %s34, %s1209
          %s1211 = smul.addr %s1210, 128
          %s1212 = scalar_lea.hbm %s7, %s1211
          %s1214 = sshll.u32 %s1202, 4
          %s1215 = int_to_ptr.vmem [resolvable:$true] %s1214
          %1217 = dma.vmem_to_hbm [thread:$0]  %s1215, 128, %s1212, %s1199
        $region72: #{_encoder_pallas.1} parent=47 // pred_fallthru
          _
      $region48: #{_encoder_pallas.1} parent=5 // pred_fallthru
        _
      %p1218 = scmp.le.s32.totalorder 2, %s25
      // Predicated region
      $region73: #{_encoder_pallas.1} parent=5 // pred_check
        %p1219 = pneg %p1218
      $region74: #{_encoder_pallas.1} parent=5 // pred_check_branch
        %1221 = sbr.rel (%p1219) target = $region76
      $region75: #{_encoder_pallas.1} parent=5 // pred_region
        %s1222 = ssub.s32 %s25, 2
        // Predicated region
        $region77: #{_encoder_pallas.1} parent=75 // pred_check
          %p1223 = pneg %p250
        $region78: #{_encoder_pallas.1} parent=75 // pred_check_branch
          %1225 = sbr.rel (%p1223) target = $region80
        $region79: #{_encoder_pallas.1} parent=75 // pred_region
          %s1226 = sand.u32 %s235, 1
          %s1227 = scalar_lea.sflag [#allocation5], %s1226
          %s1228 = sand.u32 %s235, 1
          %s1229 = smul.addr %s1228, 8
          %s1230 = scalar_lea.vmem [#allocation11], %s1229
          %1231 = dma.done %s1227, 128
        $region80: #{_encoder_pallas.1} parent=75 // pred_fallthru
          _
      $region76: #{_encoder_pallas.1} parent=5 // pred_fallthru
        _
    $region6: #{_encoder_pallas.1} parent=1 // loop_footer
      %s29 = sadd.s32 1, %s25
    $region7: #{_encoder_pallas.1} parent=1 // loop_footer_branch
      %24 = sbr.rel target = $region3
    $region8: #{_encoder_pallas.1} parent=1 // loop_exit
      _
    %1232 = vsyncpa [#allocation4], 1
    %s1233 = scalar_lea.sflag [#allocation4], 1
    %1234 = vsyncpa %s1233, 1
    %1235 = vsyncpa [#allocation7], 1
    %s1236 = scalar_lea.sflag [#allocation7], 1
    %1237 = vsyncpa %s1236, 1
    %1238 = vsyncpa [#allocation10], 1
    %s1239 = scalar_lea.sflag [#allocation10], 1
    %1240 = vsyncpa %s1239, 1
    %1241 = vsyncpa [#allocation5], 1
    %s1242 = scalar_lea.sflag [#allocation5], 1
    %1243 = vsyncpa %s1242, 1

</llo_original>
